<compile_context>
chip_gen: v7x
topology: tpu7x:2x2x1
jax: 0.10.0
libtpu: 0.0.40
codegen_flags: <defaults>
</compile_context>

<pallas_src>
import math
import functools

import jax
import jax.numpy as jnp
from jax import lax
from jax.experimental import pallas as pl
from jax.experimental.pallas import tpu as pltpu


def _cross_attn_kernel(
    # inputs
    tgt_ref, qT_ref, kT_ref, vT_ref,
    wq_ref, wk_ref, wv_ref, woT_ref,
    bq_ref, bo_ref, gamma_ref, beta_ref,
    # outputs
    out_ref,
    # scratch
    q_scr, m_scr, l_scr, acc_scr,
    *, nhead: int, head_dim: int, ln_eps: float,
    s_total: int, block_s: int, compute_dtype,
):
    f32 = jnp.float32
    s_idx = pl.program_id(1)

    # ---------------- per-batch init: scaled Q projection + flash stats ----------
    @pl.when(s_idx == 0)
    def _init():
        # q^T = Wq @ (tgt + query_pos)^T  (bq folded, 1/sqrt(Dh) folded), f32.
        qT = jnp.dot(wq_ref[...], qT_ref[0], preferred_element_type=f32)      # (E, L)
        qT = (qT + bq_ref[...]) * (1.0 / math.sqrt(head_dim))
        q_h = qT.reshape(nhead, head_dim, qT.shape[-1])                       # (H, Dh, L)
        q_scr[...] = jnp.transpose(q_h, (0, 2, 1)).astype(compute_dtype)      # (H, L, Dh)
        m_scr[...] = jnp.full(m_scr.shape, -jnp.inf, f32)
        l_scr[...] = jnp.zeros(l_scr.shape, f32)
        acc_scr[...] = jnp.zeros(acc_scr.shape, f32)

    # ---------------- per-S-tile: fused K/V projection + batched flash ----------
    # Full-width MXU projections in the transposed layout (E, TS); bk dropped
    # (softmax-invariant), bv folded into bo_eff in the wrapper.
    kT = jnp.dot(wk_ref[...], kT_ref[0], preferred_element_type=compute_dtype)  # (E, TS)
    vT = jnp.dot(wv_ref[...], vT_ref[0], preferred_element_type=compute_dtype)  # (E, TS)
    kT_h = kT.reshape(nhead, head_dim, block_s)      # (H, Dh, TS): free major split
    vT_h = vT.reshape(nhead, head_dim, block_s)

    # Batched-head logits: (H, L, Dh) x (H, Dh, TS) -> (H, L, TS), f32 acc.
    logits = lax.dot_general(q_scr[...], kT_h, (((2,), (1,)), ((0,), (0,))),
                             preferred_element_type=f32)
    if (s_total % block_s) != 0:
        # Single additive bias per tile (0 on valid keys, -1e30 on padded keys).
        col = s_idx * block_s + lax.broadcasted_iota(jnp.int32, (1, 1, block_s), 2)
        logits = logits + jnp.where(col < s_total, 0.0, -1e30)

    m_prev = m_scr[...]                                                       # (H, L, 1)
    m_new = jnp.maximum(m_prev, jnp.max(logits, axis=-1, keepdims=True))
    alpha = jnp.exp(m_prev - m_new)
    p = jnp.exp(logits - m_new)                                               # f32
    l_scr[...] = alpha * l_scr[...] + jnp.sum(p, axis=-1, keepdims=True)
    pv = lax.dot_general(p.astype(compute_dtype), vT_h,
                         (((2,), (2,)), ((0,), (0,))),
                         preferred_element_type=f32)                          # (H, L, Dh)
    acc_scr[...] = alpha * acc_scr[...] + pv
    m_scr[...] = m_new

    # ---------------- finalize: normalize, out-proj, residual, LayerNorm ---------
    @pl.when(s_idx == pl.num_programs(1) - 1)
    def _finalize():
        proj = None
        for h in range(nhead):
            l_h = l_scr[h]                                                    # (L, 1)
            inv = pl.reciprocal(l_h, approx=True)
            inv = inv * (2.0 - l_h * inv)        # one Newton step -> full precision
            attn_h = (acc_scr[h] * inv).astype(compute_dtype)                 # (L, Dh)
            d = jnp.dot(attn_h, woT_ref[h * head_dim:(h + 1) * head_dim, :],
                        preferred_element_type=f32)                           # (L, E)
            proj = d if proj is None else proj + d
        x = tgt_ref[0].astype(f32) + proj + bo_ref[...]   # bo_eff = bo + Wo @ bv
        mean = jnp.mean(x, axis=-1, keepdims=True)
        var = jnp.mean(jnp.square(x - mean), axis=-1, keepdims=True)
        y = (x - mean) * lax.rsqrt(var + ln_eps)
        out_ref[0] = (y * gamma_ref[...] + beta_ref[...]).astype(out_ref.dtype)


def cross_attention_layer(tgt, memory, params, *, nhead, pos=None, query_pos=None,
                          compute_dtype=jnp.bfloat16, block_s=2048, ln_eps=1e-5):
    """Pallas implementation of CrossAttentionLayer.forward_post.

    tgt    : (L, B, E)  -- PyTorch MHA (seq, batch, embed) convention
    memory : (S, B, E)
    pos / query_pos: optional, same shapes as memory / tgt.
    """
    L, B, E = tgt.shape
    S = memory.shape[0]
    head_dim = E // nhead
    assert head_dim * nhead == E

    if query_pos is None:
        query_pos = jnp.zeros_like(tgt)
    if pos is None:
        pos = jnp.zeros_like(memory)

    # TODO(synk): memory_mask / memory_key_padding_mask not implemented (None case only).
    # TODO(synk): forward_pre (normalize_before=True) variant not implemented.
    # TODO(synk): for v7x with B == 1, add a second parallel grid axis (e.g. head
    #             groups) so both TensorCores get work.
    # TODO(synk): single-buffer the grid-invariant weight/bias operands via
    #             pipeline_mode=pl.Buffered(1) once validated on the target jax build.

    f32 = jnp.float32

    # Transposed, compute-dtype layouts so the kernel never relayouts K/V tiles:
    #   q_in^T : (B, E, L),  k_in^T/v_in^T : (B, E, S)   (memory+pos fused here).
    tgt_b = jnp.transpose(tgt, (1, 0, 2))                                     # (B, L, E) f32
    qT_in = jnp.transpose(tgt + query_pos, (1, 2, 0)).astype(compute_dtype)   # (B, E, L)
    kT_in = jnp.transpose(memory + pos, (1, 2, 0)).astype(compute_dtype)      # (B, E, S)
    vT_in = jnp.transpose(memory, (1, 2, 0)).astype(compute_dtype)            # (B, E, S)

    # S tiling: lane dim of the K/V tiles is S, so a partial tile must be a
    # multiple of 128 (or cover S entirely). Pad + mask in-kernel if needed.
    if S <= block_s:
        blk_s, num_s, S_pad = S, 1, S
    else:
        blk_s = max(128, (min(block_s, S) // 128) * 128)
        num_s = -(-S // blk_s)
        S_pad = num_s * blk_s
    if S_pad != S:
        padn = S_pad - S
        kT_in = jnp.pad(kT_in, ((0, 0), (0, 0), (0, padn)))
        vT_in = jnp.pad(vT_in, ((0, 0), (0, 0), (0, padn)))

    # Weights: Wq/Wk/Wv used un-transposed (PyTorch (out,in)) since the kernel
    # computes W @ x^T; Wo is pre-transposed for the head-sliced out-projection.
    wq = params["wq"].astype(compute_dtype)
    wk = params["wk"].astype(compute_dtype)
    wv = params["wv"].astype(compute_dtype)
    woT = params["wo"].T.astype(compute_dtype)                                # (E, E)
    bq = params["bq"].reshape(E, 1).astype(f32)
    # bk dropped (softmax-invariant); bv folded: bo_eff = bo + Wo @ bv (exact).
    bo_eff = (params["bo"].astype(f32)
              + params["wo"].astype(f32) @ params["bv"].astype(f32)).reshape(1, E)
    gamma = params["ln_w"].reshape(1, E).astype(f32)
    beta = params["ln_b"].reshape(1, E).astype(f32)

    kernel = functools.partial(
        _cross_attn_kernel, nhead=nhead, head_dim=head_dim, ln_eps=ln_eps,
        s_total=S, block_s=blk_s, compute_dtype=compute_dtype)

    tgt_spec = pl.BlockSpec((1, L, E), lambda b, s: (b, 0, 0))
    qT_spec = pl.BlockSpec((1, E, L), lambda b, s: (b, 0, 0))
    kv_spec = pl.BlockSpec((1, E, blk_s), lambda b, s: (b, 0, s))
    mat_spec = pl.BlockSpec((E, E), lambda b, s: (0, 0))
    colv_spec = pl.BlockSpec((E, 1), lambda b, s: (0, 0))
    rowv_spec = pl.BlockSpec((1, E), lambda b, s: (0, 0))

    # VMEM budget from the actual footprint (double-buffered tiles + scratch +
    # in-kernel f32 logits/p intermediates), with margin; clamped for v7x.
    cb = jnp.dtype(compute_dtype).itemsize
    est = (2 * L * E * 4                     # tgt block (f32)
           + 2 * E * L * cb                  # q_in^T block
           + 2 * 2 * E * blk_s * cb          # k_in^T / v_in^T tiles
           + 2 * 4 * E * E * cb              # Wq, Wk, Wv, Wo^T
           + 2 * 4 * E * 4                   # bq, bo_eff, gamma, beta
           + 2 * L * E * 4                   # output block
           + nhead * L * head_dim * (cb + 4) # q_scr + acc_scr
           + 2 * nhead * L * 4               # m, l
           + 2 * E * blk_s * cb              # projected kT / vT values
           + 3 * nhead * L * blk_s * 4)      # logits / p / exp temporaries
    vmem_limit = int(min(max(int(est * 1.4) + (2 << 20), 16 << 20), 56 << 20))

    out_b = pl.pallas_call(
        kernel,
        out_shape=jax.ShapeDtypeStruct((B, L, E), tgt.dtype),
        grid_spec=pltpu.PrefetchScalarGridSpec(
            num_scalar_prefetch=0,
            grid=(B, num_s),
            in_specs=[
                tgt_spec, qT_spec,                         # tgt (residual), q_in^T
                kv_spec, kv_spec,                          # k_in^T, v_in^T (S-tiled)
                mat_spec, mat_spec, mat_spec, mat_spec,    # Wq, Wk, Wv, Wo^T
                colv_spec, rowv_spec,                      # bq, bo_eff
                rowv_spec, rowv_spec,                      # gamma, beta
            ],
            out_specs=pl.BlockSpec((1, L, E), lambda b, s: (b, 0, 0)),
            scratch_shapes=[
                pltpu.VMEM((nhead, L, head_dim), compute_dtype),   # scaled Q (per head)
                pltpu.VMEM((nhead, L, 1), jnp.float32),            # running row-max
                pltpu.VMEM((nhead, L, 1), jnp.float32),            # running denominator
                pltpu.VMEM((nhead, L, head_dim), jnp.float32),     # running numerator
            ],
        ),
        compiler_params=pltpu.CompilerParams(
            dimension_semantics=("parallel", "arbitrary"),
            vmem_limit_bytes=vmem_limit,
        ),
    )(
        tgt_b, qT_in, kT_in, vT_in,
        wq, wk, wv, woT,
        bq, bo_eff, gamma, beta,
    )

    return jnp.transpose(out_b, (1, 0, 2))                                    # (L, B, E)


def _xavier_uniform(key, shape):
    fan_out, fan_in = shape
    bound = math.sqrt(6.0 / (fan_in + fan_out))
    return jax.random.uniform(key, shape, jnp.float32, -bound, bound)


def init_params(key, d_model):
    # nn.MultiheadAttention: in_proj_weight (3E, E) xavier-uniform, biases zero;
    # out_proj: xavier-uniform weight, zero bias. LayerNorm: ones / zeros.
    k_in, k_out = jax.random.split(key)
    in_proj_w = _xavier_uniform(k_in, (3 * d_model, d_model))
    wq, wk, wv = jnp.split(in_proj_w, 3, axis=0)
    return {
        "wq": wq, "wk": wk, "wv": wv,
        "wo": _xavier_uniform(k_out, (d_model, d_model)),
        "bq": jnp.zeros((d_model,), jnp.float32),
        "bk": jnp.zeros((d_model,), jnp.float32),
        "bv": jnp.zeros((d_model,), jnp.float32),
        "bo": jnp.zeros((d_model,), jnp.float32),
        "ln_w": jnp.ones((d_model,), jnp.float32),
        "ln_b": jnp.zeros((d_model,), jnp.float32),
    }


def _reference(tgt, memory, params, *, nhead, pos, query_pos):
    """Pure-JAX f32 reference mirroring nn.MultiheadAttention forward_post."""
    L, B, E = tgt.shape
    S = memory.shape[0]
    Dh = E // nhead
    q_in = tgt + query_pos
    k_in = memory + pos
    v_in = memory
    q = jnp.einsum("lbe,fe->lbf", q_in, params["wq"]) + params["bq"]
    k = jnp.einsum("sbe,fe->sbf", k_in, params["wk"]) + params["bk"]
    v = jnp.einsum("sbe,fe->sbf", v_in, params["wv"]) + params["bv"]
    q = q.reshape(L, B, nhead, Dh).transpose(1, 2, 0, 3)   # (B,H,L,Dh)
    k = k.reshape(S, B, nhead, Dh).transpose(1, 2, 0, 3)   # (B,H,S,Dh)
    v = v.reshape(S, B, nhead, Dh).transpose(1, 2, 0, 3)
    s = jnp.einsum("bhld,bhsd->bhls", q, k) / math.sqrt(Dh)
    p = jax.nn.softmax(s, axis=-1)
    o = jnp.einsum("bhls,bhsd->bhld", p, v)                # (B,H,L,Dh)
    o = o.transpose(2, 0, 1, 3).reshape(L, B, E)
    o = jnp.einsum("lbe,fe->lbf", o, params["wo"]) + params["bo"]
    x = tgt + o
    mean = jnp.mean(x, axis=-1, keepdims=True)
    var = jnp.mean(jnp.square(x - mean), axis=-1, keepdims=True)
    y = (x - mean) / jnp.sqrt(var + 1e-5)
    return y * params["ln_w"] + params["ln_b"]


if __name__ == "__main__":
    d_model, nhead = 32, 4
    L, B = 8, 2

    key = jax.random.PRNGKey(0)
    k_p, k_t, k_qpos, k_b, k_mem = jax.random.split(key, 5)

    params = init_params(k_p, d_model)
    # Randomize biases / LN affine so those code paths are actually exercised.
    kb1, kb2, kb3, kb4, kb5, kb6 = jax.random.split(k_b, 6)
    params["bq"] = 0.1 * jax.random.normal(kb1, (d_model,), jnp.float32)
    params["bk"] = 0.1 * jax.random.normal(kb2, (d_model,), jnp.float32)
    params["bv"] = 0.1 * jax.random.normal(kb3, (d_model,), jnp.float32)
    params["bo"] = 0.1 * jax.random.normal(kb4, (d_model,), jnp.float32)
    params["ln_w"] = 1.0 + 0.1 * jax.random.normal(kb5, (d_model,), jnp.float32)
    params["ln_b"] = 0.1 * jax.random.normal(kb6, (d_model,), jnp.float32)

    tgt = jax.random.normal(k_t, (L, B, d_model), jnp.float32)
    query_pos = jax.random.normal(k_qpos, (L, B, d_model), jnp.float32)

    def make_mem(seed, S):
        km, kp = jax.random.split(jax.random.PRNGKey(seed))
        memory = jax.random.normal(km, (S, B, d_model), jnp.float32)
        pos = jax.random.normal(kp, (S, B, d_model), jnp.float32)
        return memory, pos

    # 1) Single tile, f32 compute path (tight tolerance).
    mem1, pos1 = make_mem(1, 16)
    ref1 = _reference(tgt, mem1, params, nhead=nhead, pos=pos1, query_pos=query_pos)
    out1 = cross_attention_layer(tgt, mem1, params, nhead=nhead, pos=pos1,
                                 query_pos=query_pos, compute_dtype=jnp.float32)
    out1 = jax.block_until_ready(out1)
    assert out1.shape == (L, B, d_model)
    assert jnp.allclose(out1, ref1, atol=2e-4, rtol=2e-4), "f32 single-tile mismatch"

    # 2) Exact multi-tile flash path (S = 256, two tiles of 128), f32.
    mem2, pos2 = make_mem(2, 256)
    ref2 = _reference(tgt, mem2, params, nhead=nhead, pos=pos2, query_pos=query_pos)
    out2 = cross_attention_layer(tgt, mem2, params, nhead=nhead, pos=pos2,
                                 query_pos=query_pos, compute_dtype=jnp.float32,
                                 block_s=128)
    out2 = jax.block_until_ready(out2)
    assert jnp.allclose(out2, ref2, atol=2e-4, rtol=2e-4), "f32 multi-tile mismatch"

    # 3) Ragged S (padding + in-kernel key masking): S = 200 -> 2 tiles of 128, f32.
    mem3, pos3 = make_mem(3, 200)
    ref3 = _reference(tgt, mem3, params, nhead=nhead, pos=pos3, query_pos=query_pos)
    out3 = cross_attention_layer(tgt, mem3, params, nhead=nhead, pos=pos3,
                                 query_pos=query_pos, compute_dtype=jnp.float32,
                                 block_s=128)
    out3 = jax.block_until_ready(out3)
    assert jnp.allclose(out3, ref3, atol=2e-4, rtol=2e-4), "masked mismatch vs reference"

    # 4) Default bf16 matmuls (f32 accumulation) -> loose tolerance vs f32 reference.
    out4 = cross_attention_layer(tgt, mem3, params, nhead=nhead, pos=pos3,
                                 query_pos=query_pos)
    out4 = jax.block_until_ready(out4)
    assert jnp.allclose(out4, ref3, atol=6e-2, rtol=6e-2), "bf16 mismatch vs reference"

    print("KERNEL_OK")
</pallas_src>

<mosaic_0001>
module attributes {stable_mosaic.version = 11 : i64} {
  func.func @_cross_attn_kernel(%arg0: i32, %arg1: i32, %arg2: memref<1x8x32xf32, #tpu.memory_space<vmem>>, %arg3: memref<1x32x8xf32, #tpu.memory_space<vmem>>, %arg4: memref<1x32x16xf32, #tpu.memory_space<vmem>>, %arg5: memref<1x32x16xf32, #tpu.memory_space<vmem>>, %arg6: memref<32x32xf32, #tpu.memory_space<vmem>>, %arg7: memref<32x32xf32, #tpu.memory_space<vmem>>, %arg8: memref<32x32xf32, #tpu.memory_space<vmem>>, %arg9: memref<32x32xf32, #tpu.memory_space<vmem>>, %arg10: memref<32x1xf32, #tpu.memory_space<vmem>>, %arg11: memref<1x32xf32, #tpu.memory_space<vmem>>, %arg12: memref<1x32xf32, #tpu.memory_space<vmem>>, %arg13: memref<1x32xf32, #tpu.memory_space<vmem>>, %arg14: memref<1x8x32xf32, #tpu.memory_space<vmem>>, %arg15: memref<4x8x8xf32, #tpu.memory_space<vmem>>, %arg16: memref<4x8x1xf32, #tpu.memory_space<vmem>>, %arg17: memref<4x8x1xf32, #tpu.memory_space<vmem>>, %arg18: memref<4x8x8xf32, #tpu.memory_space<vmem>>) attributes {dimension_semantics = [#tpu.dimension_semantics<parallel>, #tpu.dimension_semantics<arbitrary>], iteration_bounds = array<i64: 2, 1>, scalar_prefetch = 0 : i64, scratch_operands = 4 : i64, tpu.core_type = #tpu.core_type<tc>, window_params = [{transform_indices = @transform_0, window_bounds = array<i64: 1, 8, 32>}, {transform_indices = @transform_1, window_bounds = array<i64: 1, 32, 8>}, {transform_indices = @transform_2, window_bounds = array<i64: 1, 32, 16>}, {transform_indices = @transform_3, window_bounds = array<i64: 1, 32, 16>}, {pipeline_mode = #tpu.pipeline_mode<synchronous>, transform_indices = @transform_4, window_bounds = array<i64: 32, 32>}, {pipeline_mode = #tpu.pipeline_mode<synchronous>, transform_indices = @transform_5, window_bounds = array<i64: 32, 32>}, {pipeline_mode = #tpu.pipeline_mode<synchronous>, transform_indices = @transform_6, window_bounds = array<i64: 32, 32>}, {pipeline_mode = #tpu.pipeline_mode<synchronous>, transform_indices = @transform_7, window_bounds = array<i64: 32, 32>}, {pipeline_mode = #tpu.pipeline_mode<synchronous>, transform_indices = @transform_8, window_bounds = array<i64: 32, 1>}, {pipeline_mode = #tpu.pipeline_mode<synchronous>, transform_indices = @transform_9, window_bounds = array<i64: 1, 32>}, {pipeline_mode = #tpu.pipeline_mode<synchronous>, transform_indices = @transform_10, window_bounds = array<i64: 1, 32>}, {pipeline_mode = #tpu.pipeline_mode<synchronous>, transform_indices = @transform_11, window_bounds = array<i64: 1, 32>}, {transform_indices = @transform_12, window_bounds = array<i64: 1, 8, 32>}]} {
    %c0_i32 = arith.constant 0 : i32
    %0 = arith.cmpi eq, %arg1, %c0_i32 : i32
    %1 = arith.extui %0 : i1 to i32
    %c0_i32_0 = arith.constant 0 : i32
    %2 = arith.cmpi ne, %1, %c0_i32_0 : i32
    scf.if %2 {
      %c0_38 = arith.constant 0 : index
      %c0_39 = arith.constant 0 : index
      %40 = vector.load %arg6[%c0_38, %c0_39] : memref<32x32xf32, #tpu.memory_space<vmem>>, vector<32x32xf32>
      %c0_40 = arith.constant 0 : index
      %c0_41 = arith.constant 0 : index
      %c0_42 = arith.constant 0 : index
      %41 = vector.load %arg3[%c0_40, %c0_41, %c0_42] : memref<1x32x8xf32, #tpu.memory_space<vmem>>, vector<1x32x8xf32>
      %42 = vector.shape_cast %41 : vector<1x32x8xf32> to vector<32x8xf32>
      %cst_43 = arith.constant dense<0.000000e+00> : vector<32x8xf32>
      %43 = tpu.matmul %40, %42, %cst_43 {dimension_numbers = #tpu.dot_dimension_numbers<[1], [0], [0], [1], [0, 0, 1, 1], [], []>} : vector<32x32xf32>, vector<32x8xf32>, vector<32x8xf32> -> vector<32x8xf32>
      %c0_44 = arith.constant 0 : index
      %c0_45 = arith.constant 0 : index
      %44 = vector.load %arg10[%c0_44, %c0_45] : memref<32x1xf32, #tpu.memory_space<vmem>>, vector<32x1xf32>
      %45 = vector.broadcast %44 : vector<32x1xf32> to vector<32x8xf32>
      %46 = arith.addf %43, %45 : vector<32x8xf32>
      %cst_46 = arith.constant 0.353553385 : f32
      %47 = vector.broadcast %cst_46 : f32 to vector<32x8xf32>
      %48 = arith.mulf %46, %47 : vector<32x8xf32>
      %49 = vector.shape_cast %48 : vector<32x8xf32> to vector<4x8x8xf32>
      %50 = tpu.transpose %49, [0, 2, 1] : vector<4x8x8xf32> -> vector<4x8x8xf32>
      %c0_47 = arith.constant 0 : index
      %c0_48 = arith.constant 0 : index
      %c0_49 = arith.constant 0 : index
      %51 = vector.load %arg15[%c0_47, %c0_48, %c0_49] : memref<4x8x8xf32, #tpu.memory_space<vmem>>, vector<4x8x8xf32>
      tpu.vector_store %arg15[%c0_47, %c0_48, %c0_49], %50 {strides = array<i32>} : memref<4x8x8xf32, #tpu.memory_space<vmem>>, vector<4x8x8xf32>,
      %cst_50 = arith.constant 0xFF800000 : f32
      %52 = vector.broadcast %cst_50 : f32 to vector<4x8x1xf32>
      %c0_51 = arith.constant 0 : index
      %c0_52 = arith.constant 0 : index
      %c0_53 = arith.constant 0 : index
      %53 = vector.load %arg16[%c0_51, %c0_52, %c0_53] : memref<4x8x1xf32, #tpu.memory_space<vmem>>, vector<4x8x1xf32>
      tpu.vector_store %arg16[%c0_51, %c0_52, %c0_53], %52 {strides = array<i32>} : memref<4x8x1xf32, #tpu.memory_space<vmem>>, vector<4x8x1xf32>,
      %cst_54 = arith.constant 0.000000e+00 : f32
      %54 = vector.broadcast %cst_54 : f32 to vector<4x8x1xf32>
      %c0_55 = arith.constant 0 : index
      %c0_56 = arith.constant 0 : index
      %c0_57 = arith.constant 0 : index
      %55 = vector.load %arg17[%c0_55, %c0_56, %c0_57] : memref<4x8x1xf32, #tpu.memory_space<vmem>>, vector<4x8x1xf32>
      tpu.vector_store %arg17[%c0_55, %c0_56, %c0_57], %54 {strides = array<i32>} : memref<4x8x1xf32, #tpu.memory_space<vmem>>, vector<4x8x1xf32>,
      %cst_58 = arith.constant 0.000000e+00 : f32
      %56 = vector.broadcast %cst_58 : f32 to vector<4x8x8xf32>
      %c0_59 = arith.constant 0 : index
      %c0_60 = arith.constant 0 : index
      %c0_61 = arith.constant 0 : index
      %57 = vector.load %arg18[%c0_59, %c0_60, %c0_61] : memref<4x8x8xf32, #tpu.memory_space<vmem>>, vector<4x8x8xf32>
      tpu.vector_store %arg18[%c0_59, %c0_60, %c0_61], %56 {strides = array<i32>} : memref<4x8x8xf32, #tpu.memory_space<vmem>>, vector<4x8x8xf32>,
    } else {
    }
    %c0 = arith.constant 0 : index
    %c0_1 = arith.constant 0 : index
    %3 = vector.load %arg7[%c0, %c0_1] : memref<32x32xf32, #tpu.memory_space<vmem>>, vector<32x32xf32>
    %c0_2 = arith.constant 0 : index
    %c0_3 = arith.constant 0 : index
    %c0_4 = arith.constant 0 : index
    %4 = vector.load %arg4[%c0_2, %c0_3, %c0_4] : memref<1x32x16xf32, #tpu.memory_space<vmem>>, vector<1x32x16xf32>
    %5 = vector.shape_cast %4 : vector<1x32x16xf32> to vector<32x16xf32>
    %cst = arith.constant dense<0.000000e+00> : vector<32x16xf32>
    %6 = tpu.matmul %3, %5, %cst {dimension_numbers = #tpu.dot_dimension_numbers<[1], [0], [0], [1], [0, 0, 1, 1], [], []>} : vector<32x32xf32>, vector<32x16xf32>, vector<32x16xf32> -> vector<32x16xf32>
    %c0_5 = arith.constant 0 : index
    %c0_6 = arith.constant 0 : index
    %7 = vector.load %arg8[%c0_5, %c0_6] : memref<32x32xf32, #tpu.memory_space<vmem>>, vector<32x32xf32>
    %c0_7 = arith.constant 0 : index
    %c0_8 = arith.constant 0 : index
    %c0_9 = arith.constant 0 : index
    %8 = vector.load %arg5[%c0_7, %c0_8, %c0_9] : memref<1x32x16xf32, #tpu.memory_space<vmem>>, vector<1x32x16xf32>
    %9 = vector.shape_cast %8 : vector<1x32x16xf32> to vector<32x16xf32>
    %cst_10 = arith.constant dense<0.000000e+00> : vector<32x16xf32>
    %10 = tpu.matmul %7, %9, %cst_10 {dimension_numbers = #tpu.dot_dimension_numbers<[1], [0], [0], [1], [0, 0, 1, 1], [], []>} : vector<32x32xf32>, vector<32x16xf32>, vector<32x16xf32> -> vector<32x16xf32>
    %11 = vector.shape_cast %6 : vector<32x16xf32> to vector<4x8x16xf32>
    %12 = vector.shape_cast %10 : vector<32x16xf32> to vector<4x8x16xf32>
    %c0_11 = arith.constant 0 : index
    %c0_12 = arith.constant 0 : index
    %c0_13 = arith.constant 0 : index
    %13 = vector.load %arg15[%c0_11, %c0_12, %c0_13] : memref<4x8x8xf32, #tpu.memory_space<vmem>>, vector<4x8x8xf32>
    %cst_14 = arith.constant dense<0.000000e+00> : vector<4x8x16xf32>
    %14 = tpu.matmul %13, %11, %cst_14 {dimension_numbers = #tpu.dot_dimension_numbers<[2], [1], [1], [2], [0, 0, 0, 1, 1, 2], [0], [0]>} : vector<4x8x8xf32>, vector<4x8x16xf32>, vector<4x8x16xf32> -> vector<4x8x16xf32>
    %c0_15 = arith.constant 0 : index
    %c0_16 = arith.constant 0 : index
    %c0_17 = arith.constant 0 : index
    %15 = vector.load %arg16[%c0_15, %c0_16, %c0_17] : memref<4x8x1xf32, #tpu.memory_space<vmem>>, vector<4x8x1xf32>
    %cst_18 = arith.constant dense<0xFF800000> : vector<4x8xf32>
    %16 = vector.multi_reduction <maximumf>, %14, %cst_18 [2] : vector<4x8x16xf32> to vector<4x8xf32>
    %17 = vector.shape_cast %16 : vector<4x8xf32> to vector<4x8x1xf32>
    %18 = arith.maximumf %15, %17 : vector<4x8x1xf32>
    %19 = arith.subf %15, %18 : vector<4x8x1xf32>
    %20 = math.exp %19 : vector<4x8x1xf32>
    %21 = vector.broadcast %18 : vector<4x8x1xf32> to vector<4x8x16xf32>
    %22 = arith.subf %14, %21 : vector<4x8x16xf32>
    %23 = math.exp %22 : vector<4x8x16xf32>
    %c0_19 = arith.constant 0 : index
    %c0_20 = arith.constant 0 : index
    %c0_21 = arith.constant 0 : index
    %24 = vector.load %arg17[%c0_19, %c0_20, %c0_21] : memref<4x8x1xf32, #tpu.memory_space<vmem>>, vector<4x8x1xf32>
    %25 = arith.mulf %20, %24 : vector<4x8x1xf32>
    %cst_22 = arith.constant dense<0.000000e+00> : vector<4x8xf32>
    %26 = vector.multi_reduction <add>, %23, %cst_22 [2] : vector<4x8x16xf32> to vector<4x8xf32>
    %27 = vector.shape_cast %26 : vector<4x8xf32> to vector<4x8x1xf32>
    %28 = arith.addf %25, %27 : vector<4x8x1xf32>
    %c0_23 = arith.constant 0 : index
    %c0_24 = arith.constant 0 : index
    %c0_25 = arith.constant 0 : index
    %29 = vector.load %arg17[%c0_23, %c0_24, %c0_25] : memref<4x8x1xf32, #tpu.memory_space<vmem>>, vector<4x8x1xf32>
    tpu.vector_store %arg17[%c0_23, %c0_24, %c0_25], %28 {strides = array<i32>} : memref<4x8x1xf32, #tpu.memory_space<vmem>>, vector<4x8x1xf32>,
    %cst_26 = arith.constant dense<0.000000e+00> : vector<4x8x8xf32>
    %30 = tpu.matmul %23, %12, %cst_26 {dimension_numbers = #tpu.dot_dimension_numbers<[2], [2], [1], [1], [0, 0, 0, 1, 1, 1], [0], [0]>} : vector<4x8x16xf32>, vector<4x8x16xf32>, vector<4x8x8xf32> -> vector<4x8x8xf32>
    %c0_27 = arith.constant 0 : index
    %c0_28 = arith.constant 0 : index
    %c0_29 = arith.constant 0 : index
    %31 = vector.load %arg18[%c0_27, %c0_28, %c0_29] : memref<4x8x8xf32, #tpu.memory_space<vmem>>, vector<4x8x8xf32>
    %32 = vector.broadcast %20 : vector<4x8x1xf32> to vector<4x8x8xf32>
    %33 = arith.mulf %32, %31 : vector<4x8x8xf32>
    %34 = arith.addf %33, %30 : vector<4x8x8xf32>
    %c0_30 = arith.constant 0 : index
    %c0_31 = arith.constant 0 : index
    %c0_32 = arith.constant 0 : index
    %35 = vector.load %arg18[%c0_30, %c0_31, %c0_32] : memref<4x8x8xf32, #tpu.memory_space<vmem>>, vector<4x8x8xf32>
    tpu.vector_store %arg18[%c0_30, %c0_31, %c0_32], %34 {strides = array<i32>} : memref<4x8x8xf32, #tpu.memory_space<vmem>>, vector<4x8x8xf32>,
    %c0_33 = arith.constant 0 : index
    %c0_34 = arith.constant 0 : index
    %c0_35 = arith.constant 0 : index
    %36 = vector.load %arg16[%c0_33, %c0_34, %c0_35] : memref<4x8x1xf32, #tpu.memory_space<vmem>>, vector<4x8x1xf32>
    tpu.vector_store %arg16[%c0_33, %c0_34, %c0_35], %18 {strides = array<i32>} : memref<4x8x1xf32, #tpu.memory_space<vmem>>, vector<4x8x1xf32>,
    %c0_i32_36 = arith.constant 0 : i32
    %37 = arith.cmpi eq, %arg1, %c0_i32_36 : i32
    %38 = arith.extui %37 : i1 to i32
    %c0_i32_37 = arith.constant 0 : i32
    %39 = arith.cmpi ne, %38, %c0_i32_37 : i32
    scf.if %39 {
      %c0_38 = arith.constant 0 : index
      %c0_39 = arith.constant 0 : index
      %c0_40 = arith.constant 0 : index
      %40 = vector.load %arg17[%c0_38, %c0_39, %c0_40] : memref<4x8x1xf32, #tpu.memory_space<vmem>>, vector<1x8x1xf32>
      %41 = vector.shape_cast %40 : vector<1x8x1xf32> to vector<8x1xf32>
      %42 = tpu.reciprocal %41 {approx = true} : vector<8x1xf32> -> vector<8x1xf32>
      %43 = arith.mulf %41, %42 : vector<8x1xf32>
      %cst_41 = arith.constant 2.000000e+00 : f32
      %44 = vector.broadcast %cst_41 : f32 to vector<8x1xf32>
      %45 = arith.subf %44, %43 : vector<8x1xf32>
      %46 = arith.mulf %42, %45 : vector<8x1xf32>
      %c0_42 = arith.constant 0 : index
      %c0_43 = arith.constant 0 : index
      %c0_44 = arith.constant 0 : index
      %47 = vector.load %arg18[%c0_42, %c0_43, %c0_44] : memref<4x8x8xf32, #tpu.memory_space<vmem>>, vector<1x8x8xf32>
      %48 = vector.shape_cast %47 : vector<1x8x8xf32> to vector<8x8xf32>
      %49 = vector.broadcast %46 : vector<8x1xf32> to vector<8x8xf32>
      %50 = arith.mulf %48, %49 : vector<8x8xf32>
      %c0_45 = arith.constant 0 : index
      %c0_46 = arith.constant 0 : index
      %51 = vector.load %arg9[%c0_45, %c0_46] : memref<32x32xf32, #tpu.memory_space<vmem>>, vector<8x32xf32>
      %cst_47 = arith.constant dense<0.000000e+00> : vector<8x32xf32>
      %52 = tpu.matmul %50, %51, %cst_47 {dimension_numbers = #tpu.dot_dimension_numbers<[1], [0], [0], [1], [0, 0, 1, 1], [], []>} : vector<8x8xf32>, vector<8x32xf32>, vector<8x32xf32> -> vector<8x32xf32>
      %c1 = arith.constant 1 : index
      %c0_48 = arith.constant 0 : index
      %c0_49 = arith.constant 0 : index
      %53 = vector.load %arg17[%c1, %c0_48, %c0_49] : memref<4x8x1xf32, #tpu.memory_space<vmem>>, vector<1x8x1xf32>
      %54 = vector.shape_cast %53 : vector<1x8x1xf32> to vector<8x1xf32>
      %55 = tpu.reciprocal %54 {approx = true} : vector<8x1xf32> -> vector<8x1xf32>
      %56 = arith.mulf %54, %55 : vector<8x1xf32>
      %cst_50 = arith.constant 2.000000e+00 : f32
      %57 = vector.broadcast %cst_50 : f32 to vector<8x1xf32>
      %58 = arith.subf %57, %56 : vector<8x1xf32>
      %59 = arith.mulf %55, %58 : vector<8x1xf32>
      %c1_51 = arith.constant 1 : index
      %c0_52 = arith.constant 0 : index
      %c0_53 = arith.constant 0 : index
      %60 = vector.load %arg18[%c1_51, %c0_52, %c0_53] : memref<4x8x8xf32, #tpu.memory_space<vmem>>, vector<1x8x8xf32>
      %61 = vector.shape_cast %60 : vector<1x8x8xf32> to vector<8x8xf32>
      %62 = vector.broadcast %59 : vector<8x1xf32> to vector<8x8xf32>
      %63 = arith.mulf %61, %62 : vector<8x8xf32>
      %c8 = arith.constant 8 : index
      %c0_54 = arith.constant 0 : index
      %64 = vector.load %arg9[%c8, %c0_54] : memref<32x32xf32, #tpu.memory_space<vmem>>, vector<8x32xf32>
      %cst_55 = arith.constant dense<0.000000e+00> : vector<8x32xf32>
      %65 = tpu.matmul %63, %64, %cst_55 {dimension_numbers = #tpu.dot_dimension_numbers<[1], [0], [0], [1], [0, 0, 1, 1], [], []>} : vector<8x8xf32>, vector<8x32xf32>, vector<8x32xf32> -> vector<8x32xf32>
      %66 = arith.addf %52, %65 : vector<8x32xf32>
      %c2 = arith.constant 2 : index
      %c0_56 = arith.constant 0 : index
      %c0_57 = arith.constant 0 : index
      %67 = vector.load %arg17[%c2, %c0_56, %c0_57] : memref<4x8x1xf32, #tpu.memory_space<vmem>>, vector<1x8x1xf32>
      %68 = vector.shape_cast %67 : vector<1x8x1xf32> to vector<8x1xf32>
      %69 = tpu.reciprocal %68 {approx = true} : vector<8x1xf32> -> vector<8x1xf32>
      %70 = arith.mulf %68, %69 : vector<8x1xf32>
      %cst_58 = arith.constant 2.000000e+00 : f32
      %71 = vector.broadcast %cst_58 : f32 to vector<8x1xf32>
      %72 = arith.subf %71, %70 : vector<8x1xf32>
      %73 = arith.mulf %69, %72 : vector<8x1xf32>
      %c2_59 = arith.constant 2 : index
      %c0_60 = arith.constant 0 : index
      %c0_61 = arith.constant 0 : index
      %74 = vector.load %arg18[%c2_59, %c0_60, %c0_61] : memref<4x8x8xf32, #tpu.memory_space<vmem>>, vector<1x8x8xf32>
      %75 = vector.shape_cast %74 : vector<1x8x8xf32> to vector<8x8xf32>
      %76 = vector.broadcast %73 : vector<8x1xf32> to vector<8x8xf32>
      %77 = arith.mulf %75, %76 : vector<8x8xf32>
      %c16 = arith.constant 16 : index
      %c0_62 = arith.constant 0 : index
      %78 = vector.load %arg9[%c16, %c0_62] : memref<32x32xf32, #tpu.memory_space<vmem>>, vector<8x32xf32>
      %cst_63 = arith.constant dense<0.000000e+00> : vector<8x32xf32>
      %79 = tpu.matmul %77, %78, %cst_63 {dimension_numbers = #tpu.dot_dimension_numbers<[1], [0], [0], [1], [0, 0, 1, 1], [], []>} : vector<8x8xf32>, vector<8x32xf32>, vector<8x32xf32> -> vector<8x32xf32>
      %80 = arith.addf %66, %79 : vector<8x32xf32>
      %c3 = arith.constant 3 : index
      %c0_64 = arith.constant 0 : index
      %c0_65 = arith.constant 0 : index
      %81 = vector.load %arg17[%c3, %c0_64, %c0_65] : memref<4x8x1xf32, #tpu.memory_space<vmem>>, vector<1x8x1xf32>
      %82 = vector.shape_cast %81 : vector<1x8x1xf32> to vector<8x1xf32>
      %83 = tpu.reciprocal %82 {approx = true} : vector<8x1xf32> -> vector<8x1xf32>
      %84 = arith.mulf %82, %83 : vector<8x1xf32>
      %cst_66 = arith.constant 2.000000e+00 : f32
      %85 = vector.broadcast %cst_66 : f32 to vector<8x1xf32>
      %86 = arith.subf %85, %84 : vector<8x1xf32>
      %87 = arith.mulf %83, %86 : vector<8x1xf32>
      %c3_67 = arith.constant 3 : index
      %c0_68 = arith.constant 0 : index
      %c0_69 = arith.constant 0 : index
      %88 = vector.load %arg18[%c3_67, %c0_68, %c0_69] : memref<4x8x8xf32, #tpu.memory_space<vmem>>, vector<1x8x8xf32>
      %89 = vector.shape_cast %88 : vector<1x8x8xf32> to vector<8x8xf32>
      %90 = vector.broadcast %87 : vector<8x1xf32> to vector<8x8xf32>
      %91 = arith.mulf %89, %90 : vector<8x8xf32>
      %c24 = arith.constant 24 : index
      %c0_70 = arith.constant 0 : index
      %92 = vector.load %arg9[%c24, %c0_70] : memref<32x32xf32, #tpu.memory_space<vmem>>, vector<8x32xf32>
      %cst_71 = arith.constant dense<0.000000e+00> : vector<8x32xf32>
      %93 = tpu.matmul %91, %92, %cst_71 {dimension_numbers = #tpu.dot_dimension_numbers<[1], [0], [0], [1], [0, 0, 1, 1], [], []>} : vector<8x8xf32>, vector<8x32xf32>, vector<8x32xf32> -> vector<8x32xf32>
      %94 = arith.addf %80, %93 : vector<8x32xf32>
      %c0_72 = arith.constant 0 : index
      %c0_73 = arith.constant 0 : index
      %c0_74 = arith.constant 0 : index
      %95 = vector.load %arg2[%c0_72, %c0_73, %c0_74] : memref<1x8x32xf32, #tpu.memory_space<vmem>>, vector<1x8x32xf32>
      %96 = vector.shape_cast %95 : vector<1x8x32xf32> to vector<8x32xf32>
      %97 = arith.addf %96, %94 : vector<8x32xf32>
      %c0_75 = arith.constant 0 : index
      %c0_76 = arith.constant 0 : index
      %98 = vector.load %arg11[%c0_75, %c0_76] : memref<1x32xf32, #tpu.memory_space<vmem>>, vector<1x32xf32>
      %99 = vector.broadcast %98 : vector<1x32xf32> to vector<8x32xf32>
      %100 = arith.addf %97, %99 : vector<8x32xf32>
      %cst_77 = arith.constant dense<0.000000e+00> : vector<8xf32>
      %101 = vector.multi_reduction <add>, %100, %cst_77 [1] : vector<8x32xf32> to vector<8xf32>
      %102 = vector.shape_cast %101 : vector<8xf32> to vector<8x1xf32>
      %cst_78 = arith.constant 3.200000e+01 : f32
      %103 = vector.broadcast %cst_78 : f32 to vector<8x1xf32>
      %104 = arith.divf %102, %103 : vector<8x1xf32>
      %105 = vector.broadcast %104 : vector<8x1xf32> to vector<8x32xf32>
      %106 = arith.subf %100, %105 : vector<8x32xf32>
      %107 = arith.mulf %106, %106 : vector<8x32xf32>
      %cst_79 = arith.constant dense<0.000000e+00> : vector<8xf32>
      %108 = vector.multi_reduction <add>, %107, %cst_79 [1] : vector<8x32xf32> to vector<8xf32>
      %109 = vector.shape_cast %108 : vector<8xf32> to vector<8x1xf32>
      %cst_80 = arith.constant 3.200000e+01 : f32
      %110 = vector.broadcast %cst_80 : f32 to vector<8x1xf32>
      %111 = arith.divf %109, %110 : vector<8x1xf32>
      %112 = vector.broadcast %104 : vector<8x1xf32> to vector<8x32xf32>
      %113 = arith.subf %100, %112 : vector<8x32xf32>
      %cst_81 = arith.constant 9.99999974E-6 : f32
      %114 = vector.broadcast %cst_81 : f32 to vector<8x1xf32>
      %115 = arith.addf %111, %114 : vector<8x1xf32>
      %116 = math.rsqrt %115 : vector<8x1xf32>
      %117 = vector.broadcast %116 : vector<8x1xf32> to vector<8x32xf32>
      %118 = arith.mulf %113, %117 : vector<8x32xf32>
      %c0_82 = arith.constant 0 : index
      %c0_83 = arith.constant 0 : index
      %119 = vector.load %arg12[%c0_82, %c0_83] : memref<1x32xf32, #tpu.memory_space<vmem>>, vector<1x32xf32>
      %120 = vector.broadcast %119 : vector<1x32xf32> to vector<8x32xf32>
      %121 = arith.mulf %118, %120 : vector<8x32xf32>
      %c0_84 = arith.constant 0 : index
      %c0_85 = arith.constant 0 : index
      %122 = vector.load %arg13[%c0_84, %c0_85] : memref<1x32xf32, #tpu.memory_space<vmem>>, vector<1x32xf32>
      %123 = vector.broadcast %122 : vector<1x32xf32> to vector<8x32xf32>
      %124 = arith.addf %121, %123 : vector<8x32xf32>
      %c0_86 = arith.constant 0 : index
      %c0_87 = arith.constant 0 : index
      %c0_88 = arith.constant 0 : index
      %125 = vector.load %arg14[%c0_86, %c0_87, %c0_88] : memref<1x8x32xf32, #tpu.memory_space<vmem>>, vector<1x8x32xf32>
      %126 = vector.shape_cast %125 : vector<1x8x32xf32> to vector<8x32xf32>
      %127 = vector.shape_cast %124 : vector<8x32xf32> to vector<1x8x32xf32>
      tpu.vector_store %arg14[%c0_86, %c0_87, %c0_88], %127 {strides = array<i32>} : memref<1x8x32xf32, #tpu.memory_space<vmem>>, vector<1x8x32xf32>,
    } else {
    }
    return
  }
  func.func @transform_0(%arg0: i32, %arg1: i32) -> (i32, i32, i32) {
    %c0_i32 = arith.constant 0 : i32
    %c0_i32_0 = arith.constant 0 : i32
    %c0_i32_1 = arith.constant 0 : i32
    return %arg0, %c0_i32, %c0_i32_0 : i32, i32, i32
  }
  func.func @transform_1(%arg0: i32, %arg1: i32) -> (i32, i32, i32) {
    %c0_i32 = arith.constant 0 : i32
    %c0_i32_0 = arith.constant 0 : i32
    %c0_i32_1 = arith.constant 0 : i32
    return %arg0, %c0_i32, %c0_i32_0 : i32, i32, i32
  }
  func.func @transform_2(%arg0: i32, %arg1: i32) -> (i32, i32, i32) {
    %c0_i32 = arith.constant 0 : i32
    %c0_i32_0 = arith.constant 0 : i32
    return %arg0, %c0_i32, %arg1 : i32, i32, i32
  }
  func.func @transform_3(%arg0: i32, %arg1: i32) -> (i32, i32, i32) {
    %c0_i32 = arith.constant 0 : i32
    %c0_i32_0 = arith.constant 0 : i32
    return %arg0, %c0_i32, %arg1 : i32, i32, i32
  }
  func.func @transform_4(%arg0: i32, %arg1: i32) -> (i32, i32) {
    %c0_i32 = arith.constant 0 : i32
    %c0_i32_0 = arith.constant 0 : i32
    %c0_i32_1 = arith.constant 0 : i32
    return %c0_i32, %c0_i32_0 : i32, i32
  }
  func.func @transform_5(%arg0: i32, %arg1: i32) -> (i32, i32) {
    %c0_i32 = arith.constant 0 : i32
    %c0_i32_0 = arith.constant 0 : i32
    %c0_i32_1 = arith.constant 0 : i32
    return %c0_i32, %c0_i32_0 : i32, i32
  }
  func.func @transform_6(%arg0: i32, %arg1: i32) -> (i32, i32) {
    %c0_i32 = arith.constant 0 : i32
    %c0_i32_0 = arith.constant 0 : i32
    %c0_i32_1 = arith.constant 0 : i32
    return %c0_i32, %c0_i32_0 : i32, i32
  }
  func.func @transform_7(%arg0: i32, %arg1: i32) -> (i32, i32) {
    %c0_i32 = arith.constant 0 : i32
    %c0_i32_0 = arith.constant 0 : i32
    %c0_i32_1 = arith.constant 0 : i32
    return %c0_i32, %c0_i32_0 : i32, i32
  }
  func.func @transform_8(%arg0: i32, %arg1: i32) -> (i32, i32) {
    %c0_i32 = arith.constant 0 : i32
    %c0_i32_0 = arith.constant 0 : i32
    %c0_i32_1 = arith.constant 0 : i32
    return %c0_i32, %c0_i32_0 : i32, i32
  }
  func.func @transform_9(%arg0: i32, %arg1: i32) -> (i32, i32) {
    %c0_i32 = arith.constant 0 : i32
    %c0_i32_0 = arith.constant 0 : i32
    %c0_i32_1 = arith.constant 0 : i32
    return %c0_i32, %c0_i32_0 : i32, i32
  }
  func.func @transform_10(%arg0: i32, %arg1: i32) -> (i32, i32) {
    %c0_i32 = arith.constant 0 : i32
    %c0_i32_0 = arith.constant 0 : i32
    %c0_i32_1 = arith.constant 0 : i32
    return %c0_i32, %c0_i32_0 : i32, i32
  }
  func.func @transform_11(%arg0: i32, %arg1: i32) -> (i32, i32) {
    %c0_i32 = arith.constant 0 : i32
    %c0_i32_0 = arith.constant 0 : i32
    %c0_i32_1 = arith.constant 0 : i32
    return %c0_i32, %c0_i32_0 : i32, i32
  }
  func.func @transform_12(%arg0: i32, %arg1: i32) -> (i32, i32, i32) {
    %c0_i32 = arith.constant 0 : i32
    %c0_i32_0 = arith.constant 0 : i32
    %c0_i32_1 = arith.constant 0 : i32
    return %arg0, %c0_i32, %c0_i32_0 : i32, i32, i32
  }
}

</mosaic_0001>

<llo_original>
// kernel: tpu_custom_call.1
$region0: #{tpu_custom_call.1}
  #allocation0 [shape = 'u32[]', space=smem, size = 0x4, offset = 0x4, fixed_abs, tag = 'smem constant byte address 0x4 - core index']
  #allocation1 [shape = 'u32[144,128]{1,0:T(1,128)}', space=vmem, size = 0x12000, scoped, tag = 'internal scratch']
  #allocation2 [shape = 'f32[4,8,8]{2,1,0:T(8,128)}', space=vmem, size = 0x4000, scoped, tag = 'scratch operand']
  #allocation3 [shape = 'f32[4,8,1]{2,1,0:T(8,128)}', space=vmem, size = 0x4000, scoped, tag = 'scratch operand']
  #allocation4 [shape = 'f32[4,8,1]{2,1,0:T(8,128)}', space=vmem, size = 0x4000, scoped, tag = 'scratch operand']
  #allocation5 [shape = 'f32[4,8,8]{2,1,0:T(8,128)}', space=vmem, size = 0x4000, scoped, tag = 'scratch operand']
  %s0 = inlined_call_operand.vmem [shape: f32[2,8,32], index: 0, kind: input, shape index: {}]
  %s1 = inlined_call_operand.vmem [shape: f32[2,32,8], index: 1, kind: input, shape index: {}]
  %s2 = inlined_call_operand.vmem [shape: f32[2,32,16], index: 2, kind: input, shape index: {}]
  %s3 = inlined_call_operand.vmem [shape: f32[2,32,16], index: 3, kind: input, shape index: {}]
  %s4 = inlined_call_operand.vmem [shape: f32[32,32], index: 4, kind: input, shape index: {}]
  %s5 = inlined_call_operand.vmem [shape: f32[32,32], index: 5, kind: input, shape index: {}]
  %s6 = inlined_call_operand.vmem [shape: f32[32,32], index: 6, kind: input, shape index: {}]
  %s7 = inlined_call_operand.vmem [shape: f32[32,32], index: 7, kind: input, shape index: {}]
  %s8 = inlined_call_operand.vmem [shape: f32[32,1], index: 8, kind: input, shape index: {}]
  %s9 = inlined_call_operand.vmem [shape: f32[1,32], index: 9, kind: input, shape index: {}]
  %s10 = inlined_call_operand.vmem [shape: f32[1,32], index: 10, kind: input, shape index: {}]
  %s11 = inlined_call_operand.vmem [shape: f32[1,32], index: 11, kind: input, shape index: {}]
  %s12 = inlined_call_operand.hbm [shape: f32[2,8,32], index: 12, kind: output, shape index: {}]
  %s13 = sld [smem:[#allocation0]]
  $region89: #{tpu_custom_call.1} parent=0
    _
  %s15 = ssub.s32 1, %s13
  %s16 = scalar_select 0, %s15, %s13
  $region1: #{tpu_custom_call.1} parent=0
    #allocation6 [shape = 'u8[8192]{0}', space=vmem, size = 0x2000, scoped, tag = 'output window, operand 0']
    #allocation7 [shape = 's32[2]{0}', space=sflag, size = 0x8, scoped, tag = 'scoped memory for tpu_custom_call.1']
    %17 = vsyncpa [#allocation7], 0
    %s18 = scalar_lea.sflag [#allocation7], 1
    %19 = vsyncpa %s18, 0
    loop: start=0, step=1, limit=4
    $region2: #{tpu_custom_call.1} parent=1 // loop_pre_header
      _
    $region3: #{tpu_custom_call.1} parent=1 // loop_header
      %s21 = sphi 0, %s25
      %p22 = scmp.ge.s32.totalorder %s21, 4
      %s28 = sphi 0, %s40
      %s29 = sphi 0, %s36
      %s30 = sphi 0, %s28
      %s31 = sphi 0, %s29
      %s32 = sphi 0, %s30
      %s33 = sphi 0, %s31
      %s43 = sphi 0, %s45
      %s46 = sphi 0, %s43
      %s47 = sphi 0, %s46
      %s63 = sphi 0, %s47
      %s69 = sphi 0, %s71
      %s72 = sphi 0, %s69
      %s73 = sphi 0, %s72
      %s89 = sphi 0, %s73
      %s97 = sphi 0, %s99
      %s100 = sphi 0, %s97
      %s101 = sphi 0, %s100
      %s117 = sphi 0, %s101
      %s125 = sphi 0, %s127
      %s128 = sphi 0, %s125
      %s129 = sphi 0, %s128
      %s145 = sphi 0, %s129
      %s149 = sphi 0, %s149
      %s151 = sphi 0, %s149
      %s152 = sphi 0, %s151
      %s166 = sphi 0, %s152
      %s170 = sphi 0, %s170
      %s172 = sphi 0, %s170
      %s173 = sphi 0, %s172
      %s187 = sphi 0, %s173
      %s191 = sphi 0, %s191
      %s193 = sphi 0, %s191
      %s194 = sphi 0, %s193
      %s208 = sphi 0, %s194
      %s212 = sphi 0, %s212
      %s214 = sphi 0, %s212
      %s215 = sphi 0, %s214
      %s229 = sphi 0, %s215
      %s233 = sphi 0, %s233
      %s235 = sphi 0, %s233
      %s236 = sphi 0, %s235
      %s250 = sphi 0, %s236
      %s254 = sphi 0, %s254
      %s256 = sphi 0, %s254
      %s257 = sphi 0, %s256
      %s271 = sphi 0, %s257
      %s275 = sphi 0, %s275
      %s277 = sphi 0, %s275
      %s278 = sphi 0, %s277
      %s292 = sphi 0, %s278
      %s296 = sphi 0, %s296
      %s298 = sphi 0, %s296
      %s299 = sphi 0, %s298
      %s313 = sphi 0, %s299
      %s319 = sphi 0, %s321
      %s322 = sphi 0, %s319
      %s323 = sphi 0, %s322
      %s339 = sphi 0, %s323
    $region4: #{tpu_custom_call.1} parent=1 // loop_header_branch
      %24 = sbr.rel (%p22) target = $region8
    $region5: #{tpu_custom_call.1} parent=1 // loop_body
      %s26 = ssub.s32 %s21, 1
      %s27 = ssub.s32 %s21, 2
      %s34 = sadd.s32 1, %s29
      %p35 = scmp.ge.s32.totalorder %s34, 1
      %s36 = scalar_select %p35, 0, %s34
      %s37 = sadd.s32 1, %s28
      %s38 = scalar_select %p35, %s37, %s28
      %p39 = scmp.ge.s32.totalorder %s38, 2
      %s40 = scalar_select %p39, 0, %s38
      %s41 = ssub.s32 %s28, %s40
      %p42 = scmp.eq.s32.totalorder %s41, 0
      %s44 = sadd.s32 %s43, 1
      %s45 = scalar_select %p42, %s43, %s44
      %p48 = pneg %p42
      %p49 = scmp.eq.s32.totalorder %s21, 1
      %p50 = por %p48, %p49
      %p51 = scmp.ne.s32.totalorder %s43, %s46
      %p52 = scmp.eq.s32.totalorder %s21, 0
      %p53 = por %p51, %p52
      %p54 = scmp.ne.s32.totalorder %s43, %s46
      %p55 = scmp.eq.s32.totalorder %s26, 1
      %p56 = por %p54, %p55
      %p57 = scmp.ne.s32.totalorder %s46, %s47
      %p58 = scmp.eq.s32.totalorder %s26, 0
      %p59 = por %p57, %p58
      %p60 = scmp.ne.s32.totalorder %s46, %s47
      %p61 = scmp.eq.s32.totalorder %s27, 1
      %p62 = por %p60, %p61
      %p64 = scmp.ne.s32.totalorder %s47, %s63
      %p65 = scmp.eq.s32.totalorder %s27, 0
      %p66 = por %p64, %p65
      %s67 = ssub.s32 %s28, %s40
      %p68 = scmp.eq.s32.totalorder %s67, 0
      %s70 = sadd.s32 %s69, 1
      %s71 = scalar_select %p68, %s69, %s70
      %p74 = pneg %p68
      %p75 = scmp.eq.s32.totalorder %s21, 1
      %p76 = por %p74, %p75
      %p77 = scmp.ne.s32.totalorder %s69, %s72
      %p78 = scmp.eq.s32.totalorder %s21, 0
      %p79 = por %p77, %p78
      %p80 = scmp.ne.s32.totalorder %s69, %s72
      %p81 = scmp.eq.s32.totalorder %s26, 1
      %p82 = por %p80, %p81
      %p83 = scmp.ne.s32.totalorder %s72, %s73
      %p84 = scmp.eq.s32.totalorder %s26, 0
      %p85 = por %p83, %p84
      %p86 = scmp.ne.s32.totalorder %s72, %s73
      %p87 = scmp.eq.s32.totalorder %s27, 1
      %p88 = por %p86, %p87
      %p90 = scmp.ne.s32.totalorder %s73, %s89
      %p91 = scmp.eq.s32.totalorder %s27, 0
      %p92 = por %p90, %p91
      %s93 = ssub.s32 %s28, %s40
      %s94 = ssub.s32 %s29, %s36
      %s95 = sor.u32 %s93, %s94
      %p96 = scmp.eq.s32.totalorder %s95, 0
      %s98 = sadd.s32 %s97, 1
      %s99 = scalar_select %p96, %s97, %s98
      %p102 = pneg %p96
      %p103 = scmp.eq.s32.totalorder %s21, 1
      %p104 = por %p102, %p103
      %p105 = scmp.ne.s32.totalorder %s97, %s100
      %p106 = scmp.eq.s32.totalorder %s21, 0
      %p107 = por %p105, %p106
      %p108 = scmp.ne.s32.totalorder %s97, %s100
      %p109 = scmp.eq.s32.totalorder %s26, 1
      %p110 = por %p108, %p109
      %p111 = scmp.ne.s32.totalorder %s100, %s101
      %p112 = scmp.eq.s32.totalorder %s26, 0
      %p113 = por %p111, %p112
      %p114 = scmp.ne.s32.totalorder %s100, %s101
      %p115 = scmp.eq.s32.totalorder %s27, 1
      %p116 = por %p114, %p115
      %p118 = scmp.ne.s32.totalorder %s101, %s117
      %p119 = scmp.eq.s32.totalorder %s27, 0
      %p120 = por %p118, %p119
      %s121 = ssub.s32 %s28, %s40
      %s122 = ssub.s32 %s29, %s36
      %s123 = sor.u32 %s121, %s122
      %p124 = scmp.eq.s32.totalorder %s123, 0
      %s126 = sadd.s32 %s125, 1
      %s127 = scalar_select %p124, %s125, %s126
      %p130 = pneg %p124
      %p131 = scmp.eq.s32.totalorder %s21, 1
      %p132 = por %p130, %p131
      %p133 = scmp.ne.s32.totalorder %s125, %s128
      %p134 = scmp.eq.s32.totalorder %s21, 0
      %p135 = por %p133, %p134
      %p136 = scmp.ne.s32.totalorder %s125, %s128
      %p137 = scmp.eq.s32.totalorder %s26, 1
      %p138 = por %p136, %p137
      %p139 = scmp.ne.s32.totalorder %s128, %s129
      %p140 = scmp.eq.s32.totalorder %s26, 0
      %p141 = por %p139, %p140
      %p142 = scmp.ne.s32.totalorder %s128, %s129
      %p143 = scmp.eq.s32.totalorder %s27, 1
      %p144 = por %p142, %p143
      %p146 = scmp.ne.s32.totalorder %s129, %s145
      %p147 = scmp.eq.s32.totalorder %s27, 0
      %p148 = por %p146, %p147
      %s150 = sadd.s32 %s149, 1
      %p153 = scmp.eq.s32.totalorder %s21, 1
      %p154 = scmp.ne.s32.totalorder %s149, %s151
      %p155 = scmp.eq.s32.totalorder %s21, 0
      %p156 = por %p154, %p155
      %p157 = scmp.ne.s32.totalorder %s149, %s151
      %p158 = scmp.eq.s32.totalorder %s26, 1
      %p159 = por %p157, %p158
      %p160 = scmp.ne.s32.totalorder %s151, %s152
      %p161 = scmp.eq.s32.totalorder %s26, 0
      %p162 = por %p160, %p161
      %p163 = scmp.ne.s32.totalorder %s151, %s152
      %p164 = scmp.eq.s32.totalorder %s27, 1
      %p165 = por %p163, %p164
      %p167 = scmp.ne.s32.totalorder %s152, %s166
      %p168 = scmp.eq.s32.totalorder %s27, 0
      %p169 = por %p167, %p168
      %s171 = sadd.s32 %s170, 1
      %p174 = scmp.eq.s32.totalorder %s21, 1
      %p175 = scmp.ne.s32.totalorder %s170, %s172
      %p176 = scmp.eq.s32.totalorder %s21, 0
      %p177 = por %p175, %p176
      %p178 = scmp.ne.s32.totalorder %s170, %s172
      %p179 = scmp.eq.s32.totalorder %s26, 1
      %p180 = por %p178, %p179
      %p181 = scmp.ne.s32.totalorder %s172, %s173
      %p182 = scmp.eq.s32.totalorder %s26, 0
      %p183 = por %p181, %p182
      %p184 = scmp.ne.s32.totalorder %s172, %s173
      %p185 = scmp.eq.s32.totalorder %s27, 1
      %p186 = por %p184, %p185
      %p188 = scmp.ne.s32.totalorder %s173, %s187
      %p189 = scmp.eq.s32.totalorder %s27, 0
      %p190 = por %p188, %p189
      %s192 = sadd.s32 %s191, 1
      %p195 = scmp.eq.s32.totalorder %s21, 1
      %p196 = scmp.ne.s32.totalorder %s191, %s193
      %p197 = scmp.eq.s32.totalorder %s21, 0
      %p198 = por %p196, %p197
      %p199 = scmp.ne.s32.totalorder %s191, %s193
      %p200 = scmp.eq.s32.totalorder %s26, 1
      %p201 = por %p199, %p200
      %p202 = scmp.ne.s32.totalorder %s193, %s194
      %p203 = scmp.eq.s32.totalorder %s26, 0
      %p204 = por %p202, %p203
      %p205 = scmp.ne.s32.totalorder %s193, %s194
      %p206 = scmp.eq.s32.totalorder %s27, 1
      %p207 = por %p205, %p206
      %p209 = scmp.ne.s32.totalorder %s194, %s208
      %p210 = scmp.eq.s32.totalorder %s27, 0
      %p211 = por %p209, %p210
      %s213 = sadd.s32 %s212, 1
      %p216 = scmp.eq.s32.totalorder %s21, 1
      %p217 = scmp.ne.s32.totalorder %s212, %s214
      %p218 = scmp.eq.s32.totalorder %s21, 0
      %p219 = por %p217, %p218
      %p220 = scmp.ne.s32.totalorder %s212, %s214
      %p221 = scmp.eq.s32.totalorder %s26, 1
      %p222 = por %p220, %p221
      %p223 = scmp.ne.s32.totalorder %s214, %s215
      %p224 = scmp.eq.s32.totalorder %s26, 0
      %p225 = por %p223, %p224
      %p226 = scmp.ne.s32.totalorder %s214, %s215
      %p227 = scmp.eq.s32.totalorder %s27, 1
      %p228 = por %p226, %p227
      %p230 = scmp.ne.s32.totalorder %s215, %s229
      %p231 = scmp.eq.s32.totalorder %s27, 0
      %p232 = por %p230, %p231
      %s234 = sadd.s32 %s233, 1
      %p237 = scmp.eq.s32.totalorder %s21, 1
      %p238 = scmp.ne.s32.totalorder %s233, %s235
      %p239 = scmp.eq.s32.totalorder %s21, 0
      %p240 = por %p238, %p239
      %p241 = scmp.ne.s32.totalorder %s233, %s235
      %p242 = scmp.eq.s32.totalorder %s26, 1
      %p243 = por %p241, %p242
      %p244 = scmp.ne.s32.totalorder %s235, %s236
      %p245 = scmp.eq.s32.totalorder %s26, 0
      %p246 = por %p244, %p245
      %p247 = scmp.ne.s32.totalorder %s235, %s236
      %p248 = scmp.eq.s32.totalorder %s27, 1
      %p249 = por %p247, %p248
      %p251 = scmp.ne.s32.totalorder %s236, %s250
      %p252 = scmp.eq.s32.totalorder %s27, 0
      %p253 = por %p251, %p252
      %s255 = sadd.s32 %s254, 1
      %p258 = scmp.eq.s32.totalorder %s21, 1
      %p259 = scmp.ne.s32.totalorder %s254, %s256
      %p260 = scmp.eq.s32.totalorder %s21, 0
      %p261 = por %p259, %p260
      %p262 = scmp.ne.s32.totalorder %s254, %s256
      %p263 = scmp.eq.s32.totalorder %s26, 1
      %p264 = por %p262, %p263
      %p265 = scmp.ne.s32.totalorder %s256, %s257
      %p266 = scmp.eq.s32.totalorder %s26, 0
      %p267 = por %p265, %p266
      %p268 = scmp.ne.s32.totalorder %s256, %s257
      %p269 = scmp.eq.s32.totalorder %s27, 1
      %p270 = por %p268, %p269
      %p272 = scmp.ne.s32.totalorder %s257, %s271
      %p273 = scmp.eq.s32.totalorder %s27, 0
      %p274 = por %p272, %p273
      %s276 = sadd.s32 %s275, 1
      %p279 = scmp.eq.s32.totalorder %s21, 1
      %p280 = scmp.ne.s32.totalorder %s275, %s277
      %p281 = scmp.eq.s32.totalorder %s21, 0
      %p282 = por %p280, %p281
      %p283 = scmp.ne.s32.totalorder %s275, %s277
      %p284 = scmp.eq.s32.totalorder %s26, 1
      %p285 = por %p283, %p284
      %p286 = scmp.ne.s32.totalorder %s277, %s278
      %p287 = scmp.eq.s32.totalorder %s26, 0
      %p288 = por %p286, %p287
      %p289 = scmp.ne.s32.totalorder %s277, %s278
      %p290 = scmp.eq.s32.totalorder %s27, 1
      %p291 = por %p289, %p290
      %p293 = scmp.ne.s32.totalorder %s278, %s292
      %p294 = scmp.eq.s32.totalorder %s27, 0
      %p295 = por %p293, %p294
      %s297 = sadd.s32 %s296, 1
      %p300 = scmp.eq.s32.totalorder %s21, 1
      %p301 = scmp.ne.s32.totalorder %s296, %s298
      %p302 = scmp.eq.s32.totalorder %s21, 0
      %p303 = por %p301, %p302
      %p304 = scmp.ne.s32.totalorder %s296, %s298
      %p305 = scmp.eq.s32.totalorder %s26, 1
      %p306 = por %p304, %p305
      %p307 = scmp.ne.s32.totalorder %s298, %s299
      %p308 = scmp.eq.s32.totalorder %s26, 0
      %p309 = por %p307, %p308
      %p310 = scmp.ne.s32.totalorder %s298, %s299
      %p311 = scmp.eq.s32.totalorder %s27, 1
      %p312 = por %p310, %p311
      %p314 = scmp.ne.s32.totalorder %s299, %s313
      %p315 = scmp.eq.s32.totalorder %s27, 0
      %p316 = por %p314, %p315
      %s317 = ssub.s32 %s28, %s40
      %p318 = scmp.eq.s32.totalorder %s317, 0
      %s320 = sadd.s32 %s319, 1
      %s321 = scalar_select %p318, %s319, %s320
      %p324 = pneg %p318
      %p325 = scmp.eq.s32.totalorder %s21, 1
      %p326 = por %p324, %p325
      %p327 = scmp.ne.s32.totalorder %s319, %s322
      %p328 = scmp.eq.s32.totalorder %s21, 0
      %p329 = por %p327, %p328
      %p330 = scmp.ne.s32.totalorder %s319, %s322
      %p331 = scmp.eq.s32.totalorder %s26, 1
      %p332 = por %p330, %p331
      %p333 = scmp.ne.s32.totalorder %s322, %s323
      %p334 = scmp.eq.s32.totalorder %s26, 0
      %p335 = por %p333, %p334
      %p336 = scmp.ne.s32.totalorder %s322, %s323
      %p337 = scmp.eq.s32.totalorder %s27, 1
      %p338 = por %p336, %p337
      %p340 = scmp.ne.s32.totalorder %s323, %s339
      %p341 = scmp.eq.s32.totalorder %s27, 0
      %p342 = por %p340, %p341
      %p343 = scmp.le.s32.totalorder 1, %s21
      %p344 = scmp.lt.s32.totalorder %s21, 3
      %p345 = pnand %p343, %p344
      %p346 = pneg %p345
      // Predicated region
      $region9: #{tpu_custom_call.1} parent=5 // pred_check
        _
      $region10: #{tpu_custom_call.1} parent=5 // pred_check_branch
        %348 = sbr.rel (%p345) target = $region12
      $region11: #{tpu_custom_call.1} parent=5 // pred_region
        %s349 = ssub.s32 %s21, 1
        // Predicated region
        $region13: #{tpu_custom_call.1} parent=11 // pred_check
          %p350 = pneg %p162
        $region14: #{tpu_custom_call.1} parent=11 // pred_check_branch
          %352 = sbr.rel (%p350) target = $region16
        $region15: #{tpu_custom_call.1} parent=11 // pred_region
          _
        $region16: #{tpu_custom_call.1} parent=11 // pred_fallthru
          _
        // Predicated region
        $region17: #{tpu_custom_call.1} parent=11 // pred_check
          %p353 = pneg %p183
        $region18: #{tpu_custom_call.1} parent=11 // pred_check_branch
          %355 = sbr.rel (%p353) target = $region20
        $region19: #{tpu_custom_call.1} parent=11 // pred_region
          _
        $region20: #{tpu_custom_call.1} parent=11 // pred_fallthru
          _
        // Predicated region
        $region21: #{tpu_custom_call.1} parent=11 // pred_check
          %p356 = pneg %p204
        $region22: #{tpu_custom_call.1} parent=11 // pred_check_branch
          %358 = sbr.rel (%p356) target = $region24
        $region23: #{tpu_custom_call.1} parent=11 // pred_region
          _
        $region24: #{tpu_custom_call.1} parent=11 // pred_fallthru
          _
        // Predicated region
        $region25: #{tpu_custom_call.1} parent=11 // pred_check
          %p359 = pneg %p225
        $region26: #{tpu_custom_call.1} parent=11 // pred_check_branch
          %361 = sbr.rel (%p359) target = $region28
        $region27: #{tpu_custom_call.1} parent=11 // pred_region
          _
        $region28: #{tpu_custom_call.1} parent=11 // pred_fallthru
          _
        // Predicated region
        $region29: #{tpu_custom_call.1} parent=11 // pred_check
          %p362 = pneg %p246
        $region30: #{tpu_custom_call.1} parent=11 // pred_check_branch
          %364 = sbr.rel (%p362) target = $region32
        $region31: #{tpu_custom_call.1} parent=11 // pred_region
          _
        $region32: #{tpu_custom_call.1} parent=11 // pred_fallthru
          _
        // Predicated region
        $region33: #{tpu_custom_call.1} parent=11 // pred_check
          %p365 = pneg %p267
        $region34: #{tpu_custom_call.1} parent=11 // pred_check_branch
          %367 = sbr.rel (%p365) target = $region36
        $region35: #{tpu_custom_call.1} parent=11 // pred_region
          _
        $region36: #{tpu_custom_call.1} parent=11 // pred_fallthru
          _
        // Predicated region
        $region37: #{tpu_custom_call.1} parent=11 // pred_check
          %p368 = pneg %p288
        $region38: #{tpu_custom_call.1} parent=11 // pred_check_branch
          %370 = sbr.rel (%p368) target = $region40
        $region39: #{tpu_custom_call.1} parent=11 // pred_region
          _
        $region40: #{tpu_custom_call.1} parent=11 // pred_fallthru
          _
        // Predicated region
        $region41: #{tpu_custom_call.1} parent=11 // pred_check
          %p371 = pneg %p309
        $region42: #{tpu_custom_call.1} parent=11 // pred_check_branch
          %373 = sbr.rel (%p371) target = $region44
        $region43: #{tpu_custom_call.1} parent=11 // pred_region
          _
        $region44: #{tpu_custom_call.1} parent=11 // pred_fallthru
          _
      $region12: #{tpu_custom_call.1} parent=5 // pred_fallthru
        _
      %p374 = scmp.lt.s32.totalorder %s21, 2
      // Predicated region
      $region45: #{tpu_custom_call.1} parent=5 // pred_check
        %p375 = pneg %p374
      $region46: #{tpu_custom_call.1} parent=5 // pred_check_branch
        %377 = sbr.rel (%p375) target = $region48
      $region47: #{tpu_custom_call.1} parent=5 // pred_region
        // Predicated region
        $region49: #{tpu_custom_call.1} parent=47 // pred_check
          %p378 = pneg %p53
        $region50: #{tpu_custom_call.1} parent=47 // pred_check_branch
          %380 = sbr.rel (%p378) target = $region52
        $region51: #{tpu_custom_call.1} parent=47 // pred_region
          %p381 = scmp.lt.s32.totalorder %s28, 1
          %s382 = scalar_select %p381, %s28, 1
          %s383 = smul.addr %s382, 8
          %s384 = scalar_lea.vmem %s0, %s383
        $region52: #{tpu_custom_call.1} parent=47 // pred_fallthru
          _
        // Predicated region
        $region53: #{tpu_custom_call.1} parent=47 // pred_check
          %p385 = pneg %p79
        $region54: #{tpu_custom_call.1} parent=47 // pred_check_branch
          %387 = sbr.rel (%p385) target = $region56
        $region55: #{tpu_custom_call.1} parent=47 // pred_region
          %p388 = scmp.lt.s32.totalorder %s28, 1
          %s389 = scalar_select %p388, %s28, 1
          %s390 = smul.addr %s389, 4
          %s391 = smul.addr %s390, 8
          %s392 = scalar_lea.vmem %s1, %s391
        $region56: #{tpu_custom_call.1} parent=47 // pred_fallthru
          _
        // Predicated region
        $region57: #{tpu_custom_call.1} parent=47 // pred_check
          %p393 = pneg %p107
        $region58: #{tpu_custom_call.1} parent=47 // pred_check_branch
          %395 = sbr.rel (%p393) target = $region60
        $region59: #{tpu_custom_call.1} parent=47 // pred_region
          %p396 = scmp.lt.s32.totalorder %s28, 1
          %s397 = scalar_select %p396, %s28, 1
          %p398 = scmp.lt.s32.totalorder %s29, 0
          %s399 = scalar_select %p398, %s29, 0
          %s400 = smul.addr %s397, 4
          %s401 = sadd.s32 %s399, %s400
          %s402 = smul.addr %s401, 8
          %s403 = scalar_lea.vmem %s2, %s402
        $region60: #{tpu_custom_call.1} parent=47 // pred_fallthru
          _
        // Predicated region
        $region61: #{tpu_custom_call.1} parent=47 // pred_check
          %p404 = pneg %p135
        $region62: #{tpu_custom_call.1} parent=47 // pred_check_branch
          %406 = sbr.rel (%p404) target = $region64
        $region63: #{tpu_custom_call.1} parent=47 // pred_region
          %p407 = scmp.lt.s32.totalorder %s28, 1
          %s408 = scalar_select %p407, %s28, 1
          %p409 = scmp.lt.s32.totalorder %s29, 0
          %s410 = scalar_select %p409, %s29, 0
          %s411 = smul.addr %s408, 4
          %s412 = sadd.s32 %s410, %s411
          %s413 = smul.addr %s412, 8
          %s414 = scalar_lea.vmem %s3, %s413
        $region64: #{tpu_custom_call.1} parent=47 // pred_fallthru
          _
      $region48: #{tpu_custom_call.1} parent=5 // pred_fallthru
        _
      %p415 = scmp.le.s32.totalorder 1, %s21
      %p416 = scmp.lt.s32.totalorder %s21, 3
      %p417 = pnand %p415, %p416
      %p418 = pneg %p417
      // Predicated region
      $region65: #{tpu_custom_call.1} parent=5 // pred_check
        _
      $region66: #{tpu_custom_call.1} parent=5 // pred_check_branch
        %420 = sbr.rel (%p417) target = $region68
      $region67: #{tpu_custom_call.1} parent=5 // pred_region
        %s421 = ssub.s32 %s21, 1
        %p422 = scmp.lt.s32.totalorder %s30, 1
        %s423 = scalar_select %p422, %s30, 1
        %s424 = smul.addr %s423, 8
        %s425 = scalar_lea.vmem %s0, %s424
        %p426 = pneg %p59
        %p427 = pneg %p56
        %p428 = scmp.lt.s32.totalorder %s30, 1
        %s429 = scalar_select %p428, %s30, 1
        %s430 = smul.addr %s429, 4
        %s431 = smul.addr %s430, 8
        %s432 = scalar_lea.vmem %s1, %s431
        %p433 = pneg %p85
        %p434 = pneg %p82
        %p435 = scmp.lt.s32.totalorder %s30, 1
        %s436 = scalar_select %p435, %s30, 1
        %p437 = scmp.lt.s32.totalorder %s31, 0
        %s438 = scalar_select %p437, %s31, 0
        %s439 = smul.addr %s436, 4
        %s440 = sadd.s32 %s438, %s439
        %s441 = smul.addr %s440, 8
        %s442 = scalar_lea.vmem %s2, %s441
        %p443 = pneg %p113
        %p444 = pneg %p110
        %p445 = scmp.lt.s32.totalorder %s30, 1
        %s446 = scalar_select %p445, %s30, 1
        %p447 = scmp.lt.s32.totalorder %s31, 0
        %s448 = scalar_select %p447, %s31, 0
        %s449 = smul.addr %s446, 4
        %s450 = sadd.s32 %s448, %s449
        %s451 = smul.addr %s450, 8
        %s452 = scalar_lea.vmem %s3, %s451
        %p453 = pneg %p141
        %p454 = pneg %p138
        %p455 = pneg %p162
        %p456 = pneg %p159
        %p457 = pneg %p183
        %p458 = pneg %p180
        %p459 = pneg %p204
        %p460 = pneg %p201
        %p461 = pneg %p225
        %p462 = pneg %p222
        %p463 = pneg %p246
        %p464 = pneg %p243
        %p465 = pneg %p267
        %p466 = pneg %p264
        %p467 = pneg %p288
        %p468 = pneg %p285
        %p469 = pneg %p309
        %p470 = pneg %p306
        %p471 = pneg %p335
        %p472 = pneg %p332
        %s473 = sand.u32 %s322, 1
        %s474 = scalar_lea.sflag [#allocation7], %s473
        %s475 = sand.u32 %s322, 1
        %s476 = smul.addr %s475, 8
        %s477 = scalar_lea.vmem [#allocation6], %s476
        %p478 = scmp.lt.s32.totalorder %s30, 1
        %s479 = scalar_select %p478, %s30, 1
        %s480 = smul.addr %s479, 8
        %s481 = scalar_lea.vmem %s0, %s480
        %p482 = scmp.lt.s32.totalorder %s30, 1
        %s483 = scalar_select %p482, %s30, 1
        %s484 = smul.addr %s483, 4
        %s485 = smul.addr %s484, 8
        %s486 = scalar_lea.vmem %s1, %s485
        %p487 = scmp.lt.s32.totalorder %s30, 1
        %s488 = scalar_select %p487, %s30, 1
        %p489 = scmp.lt.s32.totalorder %s31, 0
        %s490 = scalar_select %p489, %s31, 0
        %s491 = smul.addr %s488, 4
        %s492 = sadd.s32 %s490, %s491
        %s493 = smul.addr %s492, 8
        %s494 = scalar_lea.vmem %s2, %s493
        %p495 = scmp.lt.s32.totalorder %s30, 1
        %s496 = scalar_select %p495, %s30, 1
        %p497 = scmp.lt.s32.totalorder %s31, 0
        %s498 = scalar_select %p497, %s31, 0
        %s499 = smul.addr %s496, 4
        %s500 = sadd.s32 %s498, %s499
        %s501 = smul.addr %s500, 8
        %s502 = scalar_lea.vmem %s3, %s501
        %p503 = scmp.eq.s32.totalorder %s31, 0
        // Predicated region
        $region69: #{tpu_custom_call.1} parent=67 // pred_check
          %p504 = pneg %p503
        $region70: #{tpu_custom_call.1} parent=67 // pred_check_branch
          %506 = sbr.rel (%p504) target = $region72
        $region71: #{tpu_custom_call.1} parent=67 // pred_region
          %v507 = vld [vmem:[%s4] sm:$0xff]
          %v508 = vld [vmem:[%s4 + $0x8] sm:$0xff]
          %v509 = vld [vmem:[%s4 + $0x10] sm:$0xff]
          %v510 = vld [vmem:[%s4 + $0x18] sm:$0xff]
          %v511 = vld [vmem:[%s486] sm:$0xff]
          %v512 = vld [vmem:[%s486 + $0x8] sm:$0xff]
          %v513 = vld [vmem:[%s486 + $0x10] sm:$0xff]
          %v514 = vld [vmem:[%s486 + $0x18] sm:$0xff]
          %v515 = vld [vmem:[%s8] sm:$0xff]
          %v516 = vld [vmem:[%s8 + $0x8] sm:$0xff]
          %v517 = vld [vmem:[%s8 + $0x10] sm:$0xff]
          %v518 = vld [vmem:[%s8 + $0x18] sm:$0xff]
          %520 = vset.pattern.permute.xlu0 0
          %521 = vperm.xlu0 %520, %v515
          %v522 = vpop.permute.xlu0 %521
          %525 = vset.pattern.permute.xlu0 0
          %526 = vperm.xlu0 %525, %v516
          %v527 = vpop.permute.xlu0 %526
          %530 = vset.pattern.permute.xlu0 0
          %531 = vperm.xlu0 %530, %v517
          %v532 = vpop.permute.xlu0 %531
          %535 = vset.pattern.permute.xlu0 0
          %536 = vperm.xlu0 %535, %v518
          %v537 = vpop.permute.xlu0 %536
          %vm539 = vcmask 261120
          %v541 = vsel %vm539, %v507, 0
          %v544 = vsel %vm539, %v508, 0
          %v547 = vsel %vm539, %v509, 0
          %v550 = vsel %vm539, %v510, 0
          %552 = vmatprep.subr.mxu0 0.0
          %553 = vmatpush1.msra.mxu0 %v511
          %554 = vmatprep.subr.mxu0 0.0
          %555 = vmatpush1.msra.mxu0 %v512
          %556 = vmatprep.subr.mxu0 0.0
          %557 = vmatpush1.msra.mxu0 %v513
          %558 = vmatprep.subr.mxu0 0.0
          %559 = vmatpush1.msra.mxu0 %v514
          %560 = vmatprep.subr.mxu0 0.0
          %561 = vmatpush1.msra.mxu0 0.0
          %562 = vmatprep.subr.mxu0 0.0
          %563 = vmatpush1.msra.mxu0 0.0
          %564 = vmatprep.subr.mxu0 0.0
          %565 = vmatpush1.msra.mxu0 0.0
          %566 = vmatprep.subr.mxu0 0.0
          %567 = vmatpush1.msra.mxu0 0.0
          %568 = vmatprep.subr.mxu0 0.0
          %569 = vmatpush1.msra.mxu0 0.0
          %570 = vmatprep.subr.mxu0 0.0
          %571 = vmatpush1.msra.mxu0 0.0
          %572 = vmatprep.subr.mxu0 0.0
          %573 = vmatpush1.msra.mxu0 0.0
          %574 = vmatprep.subr.mxu0 0.0
          %575 = vmatpush1.msra.mxu0 0.0
          %576 = vmatprep.subr.mxu0 0.0
          %577 = vmatpush1.msra.mxu0 0.0
          %578 = vmatprep.subr.mxu0 0.0
          %579 = vmatpush1.msra.mxu0 0.0
          %580 = vmatprep.subr.mxu0 0.0
          %581 = vmatpush1.msra.mxu0 0.0
          %582 = vmatprep.subr.mxu0 0.0
          %583 = vmatpush1.msra.mxu0 0.0
          %584 = vmatprep.subr.mxu0 0.0
          %585 = vmatpush1.msra.mxu0 0.0
          %586 = vmatprep.subr.mxu0 0.0
          %587 = vmatpush1.msra.mxu0 0.0
          %588 = vmatprep.subr.mxu0 0.0
          %589 = vmatpush1.msra.mxu0 0.0
          %590 = vmatprep.subr.mxu0 0.0
          %591 = vmatpush1.msra.mxu0 0.0
          %592 = vmatprep.subr.mxu0 0.0
          %593 = vmatpush1.msra.mxu0 0.0
          %594 = vmatprep.subr.mxu0 0.0
          %595 = vmatpush1.msra.mxu0 0.0
          %596 = vmatprep.subr.mxu0 0.0
          %597 = vmatpush1.msra.mxu0 0.0
          %598 = vmatprep.subr.mxu0 0.0
          %599 = vmatpush1.msra.mxu0 0.0
          %600 = vmatprep.subr.mxu0 0.0
          %601 = vmatpush1.msra.mxu0 0.0
          %602 = vmatprep.subr.mxu0 0.0
          %603 = vmatpush1.msra.mxu0 0.0
          %604 = vmatprep.subr.mxu0 0.0
          %605 = vmatpush1.msra.mxu0 0.0
          %606 = vmatprep.subr.mxu0 0.0
          %607 = vmatpush1.msra.mxu0 0.0
          %608 = vmatprep.subr.mxu0 0.0
          %609 = vmatpush1.msra.mxu0 0.0
          %610 = vmatprep.subr.mxu0 0.0
          %611 = vmatpush1.msra.mxu0 0.0
          %612 = vmatprep.subr.mxu0 0.0
          %613 = vmatpush1.msra.mxu0 0.0
          %614 = vmatprep.subr.mxu0 0.0
          %615 = vmatpush1.msra.mxu0 0.0
          %616 = vmatprep.mubr.f32.mxu0 0.0
          %617 = vmatmul.mubr.f32.gmra.mrb[0].mxu0 %v541
          %v618 = vpop.f32.mrb[0].mxu0
          %v619 = vadd.f32 %v522, %v618
          %v620 = vpop.f32.mrb[0].mxu0
          %621 = vmatprep.mubr.f32.mxu0 0.0
          %622 = vmatmul.mubr.f32.gmra.mrb[0].mxu0 %v544
          %v623 = vpop.f32.mrb[0].mxu0
          %v624 = vadd.f32 %v527, %v623
          %v625 = vpop.f32.mrb[0].mxu0
          %626 = vmatprep.mubr.f32.mxu0 0.0
          %627 = vmatmul.mubr.f32.gmra.mrb[0].mxu0 %v547
          %v628 = vpop.f32.mrb[0].mxu0
          %v629 = vadd.f32 %v532, %v628
          %v630 = vpop.f32.mrb[0].mxu0
          %631 = vmatprep.mubr.f32.mxu0 0.0
          %632 = vmatmul.mubr.f32.gmra.mrb[0].mxu0 %v550
          %v633 = vpop.f32.mrb[0].mxu0
          %v634 = vadd.f32 %v537, %v633
          %v635 = vpop.f32.mrb[0].mxu0
          %636 = vdwg.mxu0
          %v637 = vmul.f32 %v619, 0.35355338
          %v638 = vmul.f32 %v624, 0.35355338
          %v639 = vmul.f32 %v629, 0.35355338
          %v640 = vmul.f32 %v634, 0.35355338
          %641 = vxpose.xlu0.b32.start [1/16] %v637, 128
          %642 = vxpose.xlu0.b32.cont [2/16] 0.0, 128
          %643 = vxpose.xlu0.b32.cont [3/16] 0.0, 128
          %644 = vxpose.xlu0.b32.cont [4/16] 0.0, 128
          %645 = vxpose.xlu0.b32.cont [5/16] 0.0, 128
          %646 = vxpose.xlu0.b32.cont [6/16] 0.0, 128
          %647 = vxpose.xlu0.b32.cont [7/16] 0.0, 128
          %648 = vxpose.xlu0.b32.cont [8/16] 0.0, 128
          %649 = vxpose.xlu0.b32.cont [9/16] 0.0, 128
          %650 = vxpose.xlu0.b32.cont [10/16] 0.0, 128
          %651 = vxpose.xlu0.b32.cont [11/16] 0.0, 128
          %652 = vxpose.xlu0.b32.cont [12/16] 0.0, 128
          %653 = vxpose.xlu0.b32.cont [13/16] 0.0, 128
          %654 = vxpose.xlu0.b32.cont [14/16] 0.0, 128
          %655 = vxpose.xlu0.b32.cont [15/16] 0.0, 128
          %656 = vxpose.xlu0.b32.end [16/16] 0.0, 128
          %v657 = vpop.trf.xlu0
          %v658 = vpop.trf.xlu0
          %v659 = vpop.trf.xlu0
          %v660 = vpop.trf.xlu0
          %v661 = vpop.trf.xlu0
          %v662 = vpop.trf.xlu0
          %v663 = vpop.trf.xlu0
          %v664 = vpop.trf.xlu0
          %v665 = vpop.trf.xlu0
          %v666 = vpop.trf.xlu0
          %v667 = vpop.trf.xlu0
          %v668 = vpop.trf.xlu0
          %v669 = vpop.trf.xlu0
          %v670 = vpop.trf.xlu0
          %v671 = vpop.trf.xlu0
          %v672 = vpop.trf.xlu0
          %673 = vxpose.xlu0.b32.start [1/16] %v638, 128
          %674 = vxpose.xlu0.b32.cont [2/16] 0.0, 128
          %675 = vxpose.xlu0.b32.cont [3/16] 0.0, 128
          %676 = vxpose.xlu0.b32.cont [4/16] 0.0, 128
          %677 = vxpose.xlu0.b32.cont [5/16] 0.0, 128
          %678 = vxpose.xlu0.b32.cont [6/16] 0.0, 128
          %679 = vxpose.xlu0.b32.cont [7/16] 0.0, 128
          %680 = vxpose.xlu0.b32.cont [8/16] 0.0, 128
          %681 = vxpose.xlu0.b32.cont [9/16] 0.0, 128
          %682 = vxpose.xlu0.b32.cont [10/16] 0.0, 128
          %683 = vxpose.xlu0.b32.cont [11/16] 0.0, 128
          %684 = vxpose.xlu0.b32.cont [12/16] 0.0, 128
          %685 = vxpose.xlu0.b32.cont [13/16] 0.0, 128
          %686 = vxpose.xlu0.b32.cont [14/16] 0.0, 128
          %687 = vxpose.xlu0.b32.cont [15/16] 0.0, 128
          %688 = vxpose.xlu0.b32.end [16/16] 0.0, 128
          %v689 = vpop.trf.xlu0
          %v690 = vpop.trf.xlu0
          %v691 = vpop.trf.xlu0
          %v692 = vpop.trf.xlu0
          %v693 = vpop.trf.xlu0
          %v694 = vpop.trf.xlu0
          %v695 = vpop.trf.xlu0
          %v696 = vpop.trf.xlu0
          %v697 = vpop.trf.xlu0
          %v698 = vpop.trf.xlu0
          %v699 = vpop.trf.xlu0
          %v700 = vpop.trf.xlu0
          %v701 = vpop.trf.xlu0
          %v702 = vpop.trf.xlu0
          %v703 = vpop.trf.xlu0
          %v704 = vpop.trf.xlu0
          %705 = vxpose.xlu0.b32.start [1/16] %v639, 128
          %706 = vxpose.xlu0.b32.cont [2/16] 0.0, 128
          %707 = vxpose.xlu0.b32.cont [3/16] 0.0, 128
          %708 = vxpose.xlu0.b32.cont [4/16] 0.0, 128
          %709 = vxpose.xlu0.b32.cont [5/16] 0.0, 128
          %710 = vxpose.xlu0.b32.cont [6/16] 0.0, 128
          %711 = vxpose.xlu0.b32.cont [7/16] 0.0, 128
          %712 = vxpose.xlu0.b32.cont [8/16] 0.0, 128
          %713 = vxpose.xlu0.b32.cont [9/16] 0.0, 128
          %714 = vxpose.xlu0.b32.cont [10/16] 0.0, 128
          %715 = vxpose.xlu0.b32.cont [11/16] 0.0, 128
          %716 = vxpose.xlu0.b32.cont [12/16] 0.0, 128
          %717 = vxpose.xlu0.b32.cont [13/16] 0.0, 128
          %718 = vxpose.xlu0.b32.cont [14/16] 0.0, 128
          %719 = vxpose.xlu0.b32.cont [15/16] 0.0, 128
          %720 = vxpose.xlu0.b32.end [16/16] 0.0, 128
          %v721 = vpop.trf.xlu0
          %v722 = vpop.trf.xlu0
          %v723 = vpop.trf.xlu0
          %v724 = vpop.trf.xlu0
          %v725 = vpop.trf.xlu0
          %v726 = vpop.trf.xlu0
          %v727 = vpop.trf.xlu0
          %v728 = vpop.trf.xlu0
          %v729 = vpop.trf.xlu0
          %v730 = vpop.trf.xlu0
          %v731 = vpop.trf.xlu0
          %v732 = vpop.trf.xlu0
          %v733 = vpop.trf.xlu0
          %v734 = vpop.trf.xlu0
          %v735 = vpop.trf.xlu0
          %v736 = vpop.trf.xlu0
          %737 = vxpose.xlu0.b32.start [1/16] %v640, 128
          %738 = vxpose.xlu0.b32.cont [2/16] 0.0, 128
          %739 = vxpose.xlu0.b32.cont [3/16] 0.0, 128
          %740 = vxpose.xlu0.b32.cont [4/16] 0.0, 128
          %741 = vxpose.xlu0.b32.cont [5/16] 0.0, 128
          %742 = vxpose.xlu0.b32.cont [6/16] 0.0, 128
          %743 = vxpose.xlu0.b32.cont [7/16] 0.0, 128
          %744 = vxpose.xlu0.b32.cont [8/16] 0.0, 128
          %745 = vxpose.xlu0.b32.cont [9/16] 0.0, 128
          %746 = vxpose.xlu0.b32.cont [10/16] 0.0, 128
          %747 = vxpose.xlu0.b32.cont [11/16] 0.0, 128
          %748 = vxpose.xlu0.b32.cont [12/16] 0.0, 128
          %749 = vxpose.xlu0.b32.cont [13/16] 0.0, 128
          %750 = vxpose.xlu0.b32.cont [14/16] 0.0, 128
          %751 = vxpose.xlu0.b32.cont [15/16] 0.0, 128
          %752 = vxpose.xlu0.b32.end [16/16] 0.0, 128
          %v753 = vpop.trf.xlu0
          %v754 = vpop.trf.xlu0
          %v755 = vpop.trf.xlu0
          %v756 = vpop.trf.xlu0
          %v757 = vpop.trf.xlu0
          %v758 = vpop.trf.xlu0
          %v759 = vpop.trf.xlu0
          %v760 = vpop.trf.xlu0
          %v761 = vpop.trf.xlu0
          %v762 = vpop.trf.xlu0
          %v763 = vpop.trf.xlu0
          %v764 = vpop.trf.xlu0
          %v765 = vpop.trf.xlu0
          %v766 = vpop.trf.xlu0
          %v767 = vpop.trf.xlu0
          %v768 = vpop.trf.xlu0
          %vm769 = vcmask 64512
          %770 = vst.msk [vmem:[#allocation2] sm:$0xff] %vm769, %v657
          %771 = vst.msk [vmem:[#allocation2 + $0x8] sm:$0xff] %vm769, %v689
          %772 = vst.msk [vmem:[#allocation2 + $0x10] sm:$0xff] %vm769, %v721
          %773 = vst.msk [vmem:[#allocation2 + $0x18] sm:$0xff] %vm769, %v753
          %vm774 = vcmask 7168
          %775 = vst.msk [vmem:[#allocation3] sm:$0xff] %vm774, -inf
          %776 = vst.msk [vmem:[#allocation3 + $0x8] sm:$0xff] %vm774, -inf
          %777 = vst.msk [vmem:[#allocation3 + $0x10] sm:$0xff] %vm774, -inf
          %778 = vst.msk [vmem:[#allocation3 + $0x18] sm:$0xff] %vm774, -inf
          %779 = vst.msk [vmem:[#allocation4] sm:$0xff] %vm774, 0.0
          %780 = vst.msk [vmem:[#allocation4 + $0x8] sm:$0xff] %vm774, 0.0
          %781 = vst.msk [vmem:[#allocation4 + $0x10] sm:$0xff] %vm774, 0.0
          %782 = vst.msk [vmem:[#allocation4 + $0x18] sm:$0xff] %vm774, 0.0
          %783 = vst.msk [vmem:[#allocation5] sm:$0xff] %vm769, 0.0
          %784 = vst.msk [vmem:[#allocation5 + $0x8] sm:$0xff] %vm769, 0.0
          %785 = vst.msk [vmem:[#allocation5 + $0x10] sm:$0xff] %vm769, 0.0
          %786 = vst.msk [vmem:[#allocation5 + $0x18] sm:$0xff] %vm769, 0.0
        $region72: #{tpu_custom_call.1} parent=67 // pred_fallthru
          _
        %v787 = vld [vmem:[%s5] sm:$0xff]
        %v788 = vld [vmem:[%s5 + $0x8] sm:$0xff]
        %v789 = vld [vmem:[%s5 + $0x10] sm:$0xff]
        %v790 = vld [vmem:[%s5 + $0x18] sm:$0xff]
        %v791 = vld [vmem:[%s494] sm:$0xff]
        %v792 = vld [vmem:[%s494 + $0x8] sm:$0xff]
        %v793 = vld [vmem:[%s494 + $0x10] sm:$0xff]
        %v794 = vld [vmem:[%s494 + $0x18] sm:$0xff]
        %vm795 = vcmask 261120
        %v797 = vsel %vm795, %v787, 0
        %v800 = vsel %vm795, %v788, 0
        %v803 = vsel %vm795, %v789, 0
        %v806 = vsel %vm795, %v790, 0
        %808 = vmatprep.subr.mxu0 0.0
        %809 = vmatpush1.msra.mxu0 %v791
        %810 = vmatprep.subr.mxu0 0.0
        %811 = vmatpush1.msra.mxu0 %v792
        %812 = vmatprep.subr.mxu0 0.0
        %813 = vmatpush1.msra.mxu0 %v793
        %814 = vmatprep.subr.mxu0 0.0
        %815 = vmatpush1.msra.mxu0 %v794
        %816 = vmatprep.subr.mxu0 0.0
        %817 = vmatpush1.msra.mxu0 0.0
        %818 = vmatprep.subr.mxu0 0.0
        %819 = vmatpush1.msra.mxu0 0.0
        %820 = vmatprep.subr.mxu0 0.0
        %821 = vmatpush1.msra.mxu0 0.0
        %822 = vmatprep.subr.mxu0 0.0
        %823 = vmatpush1.msra.mxu0 0.0
        %824 = vmatprep.subr.mxu0 0.0
        %825 = vmatpush1.msra.mxu0 0.0
        %826 = vmatprep.subr.mxu0 0.0
        %827 = vmatpush1.msra.mxu0 0.0
        %828 = vmatprep.subr.mxu0 0.0
        %829 = vmatpush1.msra.mxu0 0.0
        %830 = vmatprep.subr.mxu0 0.0
        %831 = vmatpush1.msra.mxu0 0.0
        %832 = vmatprep.subr.mxu0 0.0
        %833 = vmatpush1.msra.mxu0 0.0
        %834 = vmatprep.subr.mxu0 0.0
        %835 = vmatpush1.msra.mxu0 0.0
        %836 = vmatprep.subr.mxu0 0.0
        %837 = vmatpush1.msra.mxu0 0.0
        %838 = vmatprep.subr.mxu0 0.0
        %839 = vmatpush1.msra.mxu0 0.0
        %840 = vmatprep.subr.mxu0 0.0
        %841 = vmatpush1.msra.mxu0 0.0
        %842 = vmatprep.subr.mxu0 0.0
        %843 = vmatpush1.msra.mxu0 0.0
        %844 = vmatprep.subr.mxu0 0.0
        %845 = vmatpush1.msra.mxu0 0.0
        %846 = vmatprep.subr.mxu0 0.0
        %847 = vmatpush1.msra.mxu0 0.0
        %848 = vmatprep.subr.mxu0 0.0
        %849 = vmatpush1.msra.mxu0 0.0
        %850 = vmatprep.subr.mxu0 0.0
        %851 = vmatpush1.msra.mxu0 0.0
        %852 = vmatprep.subr.mxu0 0.0
        %853 = vmatpush1.msra.mxu0 0.0
        %854 = vmatprep.subr.mxu0 0.0
        %855 = vmatpush1.msra.mxu0 0.0
        %856 = vmatprep.subr.mxu0 0.0
        %857 = vmatpush1.msra.mxu0 0.0
        %858 = vmatprep.subr.mxu0 0.0
        %859 = vmatpush1.msra.mxu0 0.0
        %860 = vmatprep.subr.mxu0 0.0
        %861 = vmatpush1.msra.mxu0 0.0
        %862 = vmatprep.subr.mxu0 0.0
        %863 = vmatpush1.msra.mxu0 0.0
        %864 = vmatprep.subr.mxu0 0.0
        %865 = vmatpush1.msra.mxu0 0.0
        %866 = vmatprep.subr.mxu0 0.0
        %867 = vmatpush1.msra.mxu0 0.0
        %868 = vmatprep.subr.mxu0 0.0
        %869 = vmatpush1.msra.mxu0 0.0
        %870 = vmatprep.subr.mxu0 0.0
        %871 = vmatpush1.msra.mxu0 0.0
        %872 = vmatprep.mubr.f32.mxu0 0.0
        %873 = vmatmul.mubr.f32.gmra.mrb[0].mxu0 %v797
        %v874 = vpop.f32.mrb[0].mxu0
        %v875 = vadd.f32 0.0, %v874
        %v876 = vpop.f32.mrb[0].mxu0
        %877 = vmatprep.mubr.f32.mxu0 0.0
        %878 = vmatmul.mubr.f32.gmra.mrb[0].mxu0 %v800
        %v879 = vpop.f32.mrb[0].mxu0
        %v880 = vadd.f32 0.0, %v879
        %v881 = vpop.f32.mrb[0].mxu0
        %882 = vmatprep.mubr.f32.mxu0 0.0
        %883 = vmatmul.mubr.f32.gmra.mrb[0].mxu0 %v803
        %v884 = vpop.f32.mrb[0].mxu0
        %v885 = vadd.f32 0.0, %v884
        %v886 = vpop.f32.mrb[0].mxu0
        %887 = vmatprep.mubr.f32.mxu0 0.0
        %888 = vmatmul.mubr.f32.gmra.mrb[0].mxu0 %v806
        %v889 = vpop.f32.mrb[0].mxu0
        %v890 = vadd.f32 0.0, %v889
        %v891 = vpop.f32.mrb[0].mxu0
        %892 = vdwg.mxu0
        %v893 = vld [vmem:[%s6] sm:$0xff]
        %v894 = vld [vmem:[%s6 + $0x8] sm:$0xff]
        %v895 = vld [vmem:[%s6 + $0x10] sm:$0xff]
        %v896 = vld [vmem:[%s6 + $0x18] sm:$0xff]
        %v897 = vld [vmem:[%s502] sm:$0xff]
        %v898 = vld [vmem:[%s502 + $0x8] sm:$0xff]
        %v899 = vld [vmem:[%s502 + $0x10] sm:$0xff]
        %v900 = vld [vmem:[%s502 + $0x18] sm:$0xff]
        %v902 = vsel %vm795, %v893, 0
        %v905 = vsel %vm795, %v894, 0
        %v908 = vsel %vm795, %v895, 0
        %v911 = vsel %vm795, %v896, 0
        %913 = vmatprep.subr.mxu0 0.0
        %914 = vmatpush1.msra.mxu0 %v897
        %915 = vmatprep.subr.mxu0 0.0
        %916 = vmatpush1.msra.mxu0 %v898
        %917 = vmatprep.subr.mxu0 0.0
        %918 = vmatpush1.msra.mxu0 %v899
        %919 = vmatprep.subr.mxu0 0.0
        %920 = vmatpush1.msra.mxu0 %v900
        %921 = vmatprep.subr.mxu0 0.0
        %922 = vmatpush1.msra.mxu0 0.0
        %923 = vmatprep.subr.mxu0 0.0
        %924 = vmatpush1.msra.mxu0 0.0
        %925 = vmatprep.subr.mxu0 0.0
        %926 = vmatpush1.msra.mxu0 0.0
        %927 = vmatprep.subr.mxu0 0.0
        %928 = vmatpush1.msra.mxu0 0.0
        %929 = vmatprep.subr.mxu0 0.0
        %930 = vmatpush1.msra.mxu0 0.0
        %931 = vmatprep.subr.mxu0 0.0
        %932 = vmatpush1.msra.mxu0 0.0
        %933 = vmatprep.subr.mxu0 0.0
        %934 = vmatpush1.msra.mxu0 0.0
        %935 = vmatprep.subr.mxu0 0.0
        %936 = vmatpush1.msra.mxu0 0.0
        %937 = vmatprep.subr.mxu0 0.0
        %938 = vmatpush1.msra.mxu0 0.0
        %939 = vmatprep.subr.mxu0 0.0
        %940 = vmatpush1.msra.mxu0 0.0
        %941 = vmatprep.subr.mxu0 0.0
        %942 = vmatpush1.msra.mxu0 0.0
        %943 = vmatprep.subr.mxu0 0.0
        %944 = vmatpush1.msra.mxu0 0.0
        %945 = vmatprep.subr.mxu0 0.0
        %946 = vmatpush1.msra.mxu0 0.0
        %947 = vmatprep.subr.mxu0 0.0
        %948 = vmatpush1.msra.mxu0 0.0
        %949 = vmatprep.subr.mxu0 0.0
        %950 = vmatpush1.msra.mxu0 0.0
        %951 = vmatprep.subr.mxu0 0.0
        %952 = vmatpush1.msra.mxu0 0.0
        %953 = vmatprep.subr.mxu0 0.0
        %954 = vmatpush1.msra.mxu0 0.0
        %955 = vmatprep.subr.mxu0 0.0
        %956 = vmatpush1.msra.mxu0 0.0
        %957 = vmatprep.subr.mxu0 0.0
        %958 = vmatpush1.msra.mxu0 0.0
        %959 = vmatprep.subr.mxu0 0.0
        %960 = vmatpush1.msra.mxu0 0.0
        %961 = vmatprep.subr.mxu0 0.0
        %962 = vmatpush1.msra.mxu0 0.0
        %963 = vmatprep.subr.mxu0 0.0
        %964 = vmatpush1.msra.mxu0 0.0
        %965 = vmatprep.subr.mxu0 0.0
        %966 = vmatpush1.msra.mxu0 0.0
        %967 = vmatprep.subr.mxu0 0.0
        %968 = vmatpush1.msra.mxu0 0.0
        %969 = vmatprep.subr.mxu0 0.0
        %970 = vmatpush1.msra.mxu0 0.0
        %971 = vmatprep.subr.mxu0 0.0
        %972 = vmatpush1.msra.mxu0 0.0
        %973 = vmatprep.subr.mxu0 0.0
        %974 = vmatpush1.msra.mxu0 0.0
        %975 = vmatprep.subr.mxu0 0.0
        %976 = vmatpush1.msra.mxu0 0.0
        %977 = vmatprep.mubr.f32.mxu0 0.0
        %978 = vmatmul.mubr.f32.gmra.mrb[0].mxu0 %v902
        %v979 = vpop.f32.mrb[0].mxu0
        %v980 = vadd.f32 0.0, %v979
        %v981 = vpop.f32.mrb[0].mxu0
        %982 = vmatprep.mubr.f32.mxu0 0.0
        %983 = vmatmul.mubr.f32.gmra.mrb[0].mxu0 %v905
        %v984 = vpop.f32.mrb[0].mxu0
        %v985 = vadd.f32 0.0, %v984
        %v986 = vpop.f32.mrb[0].mxu0
        %987 = vmatprep.mubr.f32.mxu0 0.0
        %988 = vmatmul.mubr.f32.gmra.mrb[0].mxu0 %v908
        %v989 = vpop.f32.mrb[0].mxu0
        %v990 = vadd.f32 0.0, %v989
        %v991 = vpop.f32.mrb[0].mxu0
        %992 = vmatprep.mubr.f32.mxu0 0.0
        %993 = vmatmul.mubr.f32.gmra.mrb[0].mxu0 %v911
        %v994 = vpop.f32.mrb[0].mxu0
        %v995 = vadd.f32 0.0, %v994
        %v996 = vpop.f32.mrb[0].mxu0
        %997 = vdwg.mxu0
        %v998 = vld [vmem:[#allocation2] sm:$0xff]
        %v999 = vld [vmem:[#allocation2 + $0x8] sm:$0xff]
        %v1000 = vld [vmem:[#allocation2 + $0x10] sm:$0xff]
        %v1001 = vld [vmem:[#allocation2 + $0x18] sm:$0xff]
        %vm1002 = vcmask 64512
        %v1004 = vsel %vm1002, %v998, 0
        %1006 = vmatprep.subr.mxu0 0.0
        %1007 = vmatpush1.msra.mxu0 %v875
        %1008 = vmatprep.subr.mxu0 0.0
        %1009 = vmatpush1.msra.mxu0 0.0
        %1010 = vmatprep.subr.mxu0 0.0
        %1011 = vmatpush1.msra.mxu0 0.0
        %1012 = vmatprep.subr.mxu0 0.0
        %1013 = vmatpush1.msra.mxu0 0.0
        %1014 = vmatprep.subr.mxu0 0.0
        %1015 = vmatpush1.msra.mxu0 0.0
        %1016 = vmatprep.subr.mxu0 0.0
        %1017 = vmatpush1.msra.mxu0 0.0
        %1018 = vmatprep.subr.mxu0 0.0
        %1019 = vmatpush1.msra.mxu0 0.0
        %1020 = vmatprep.subr.mxu0 0.0
        %1021 = vmatpush1.msra.mxu0 0.0
        %1022 = vmatprep.subr.mxu0 0.0
        %1023 = vmatpush1.msra.mxu0 0.0
        %1024 = vmatprep.subr.mxu0 0.0
        %1025 = vmatpush1.msra.mxu0 0.0
        %1026 = vmatprep.subr.mxu0 0.0
        %1027 = vmatpush1.msra.mxu0 0.0
        %1028 = vmatprep.subr.mxu0 0.0
        %1029 = vmatpush1.msra.mxu0 0.0
        %1030 = vmatprep.subr.mxu0 0.0
        %1031 = vmatpush1.msra.mxu0 0.0
        %1032 = vmatprep.subr.mxu0 0.0
        %1033 = vmatpush1.msra.mxu0 0.0
        %1034 = vmatprep.subr.mxu0 0.0
        %1035 = vmatpush1.msra.mxu0 0.0
        %1036 = vmatprep.subr.mxu0 0.0
        %1037 = vmatpush1.msra.mxu0 0.0
        %1038 = vmatprep.subr.mxu0 0.0
        %1039 = vmatpush1.msra.mxu0 0.0
        %1040 = vmatprep.subr.mxu0 0.0
        %1041 = vmatpush1.msra.mxu0 0.0
        %1042 = vmatprep.subr.mxu0 0.0
        %1043 = vmatpush1.msra.mxu0 0.0
        %1044 = vmatprep.subr.mxu0 0.0
        %1045 = vmatpush1.msra.mxu0 0.0
        %1046 = vmatprep.subr.mxu0 0.0
        %1047 = vmatpush1.msra.mxu0 0.0
        %1048 = vmatprep.subr.mxu0 0.0
        %1049 = vmatpush1.msra.mxu0 0.0
        %1050 = vmatprep.subr.mxu0 0.0
        %1051 = vmatpush1.msra.mxu0 0.0
        %1052 = vmatprep.subr.mxu0 0.0
        %1053 = vmatpush1.msra.mxu0 0.0
        %1054 = vmatprep.subr.mxu0 0.0
        %1055 = vmatpush1.msra.mxu0 0.0
        %1056 = vmatprep.subr.mxu0 0.0
        %1057 = vmatpush1.msra.mxu0 0.0
        %1058 = vmatprep.subr.mxu0 0.0
        %1059 = vmatpush1.msra.mxu0 0.0
        %1060 = vmatprep.subr.mxu0 0.0
        %1061 = vmatpush1.msra.mxu0 0.0
        %1062 = vmatprep.subr.mxu0 0.0
        %1063 = vmatpush1.msra.mxu0 0.0
        %1064 = vmatprep.subr.mxu0 0.0
        %1065 = vmatpush1.msra.mxu0 0.0
        %1066 = vmatprep.subr.mxu0 0.0
        %1067 = vmatpush1.msra.mxu0 0.0
        %1068 = vmatprep.subr.mxu0 0.0
        %1069 = vmatpush1.msra.mxu0 0.0
        %1070 = vmatprep.mubr.f32.mxu0 0.0
        %1071 = vmatmul.mubr.f32.gmra.mrb[0].mxu0 %v1004
        %v1072 = vpop.f32.mrb[0].mxu0
        %v1073 = vadd.f32 0.0, %v1072
        %v1074 = vpop.f32.mrb[0].mxu0
        %1075 = vdwg.mxu0
        %v1077 = vsel %vm1002, %v999, 0
        %1079 = vmatprep.subr.mxu0 0.0
        %1080 = vmatpush1.msra.mxu0 %v880
        %1081 = vmatprep.subr.mxu0 0.0
        %1082 = vmatpush1.msra.mxu0 0.0
        %1083 = vmatprep.subr.mxu0 0.0
        %1084 = vmatpush1.msra.mxu0 0.0
        %1085 = vmatprep.subr.mxu0 0.0
        %1086 = vmatpush1.msra.mxu0 0.0
        %1087 = vmatprep.subr.mxu0 0.0
        %1088 = vmatpush1.msra.mxu0 0.0
        %1089 = vmatprep.subr.mxu0 0.0
        %1090 = vmatpush1.msra.mxu0 0.0
        %1091 = vmatprep.subr.mxu0 0.0
        %1092 = vmatpush1.msra.mxu0 0.0
        %1093 = vmatprep.subr.mxu0 0.0
        %1094 = vmatpush1.msra.mxu0 0.0
        %1095 = vmatprep.subr.mxu0 0.0
        %1096 = vmatpush1.msra.mxu0 0.0
        %1097 = vmatprep.subr.mxu0 0.0
        %1098 = vmatpush1.msra.mxu0 0.0
        %1099 = vmatprep.subr.mxu0 0.0
        %1100 = vmatpush1.msra.mxu0 0.0
        %1101 = vmatprep.subr.mxu0 0.0
        %1102 = vmatpush1.msra.mxu0 0.0
        %1103 = vmatprep.subr.mxu0 0.0
        %1104 = vmatpush1.msra.mxu0 0.0
        %1105 = vmatprep.subr.mxu0 0.0
        %1106 = vmatpush1.msra.mxu0 0.0
        %1107 = vmatprep.subr.mxu0 0.0
        %1108 = vmatpush1.msra.mxu0 0.0
        %1109 = vmatprep.subr.mxu0 0.0
        %1110 = vmatpush1.msra.mxu0 0.0
        %1111 = vmatprep.subr.mxu0 0.0
        %1112 = vmatpush1.msra.mxu0 0.0
        %1113 = vmatprep.subr.mxu0 0.0
        %1114 = vmatpush1.msra.mxu0 0.0
        %1115 = vmatprep.subr.mxu0 0.0
        %1116 = vmatpush1.msra.mxu0 0.0
        %1117 = vmatprep.subr.mxu0 0.0
        %1118 = vmatpush1.msra.mxu0 0.0
        %1119 = vmatprep.subr.mxu0 0.0
        %1120 = vmatpush1.msra.mxu0 0.0
        %1121 = vmatprep.subr.mxu0 0.0
        %1122 = vmatpush1.msra.mxu0 0.0
        %1123 = vmatprep.subr.mxu0 0.0
        %1124 = vmatpush1.msra.mxu0 0.0
        %1125 = vmatprep.subr.mxu0 0.0
        %1126 = vmatpush1.msra.mxu0 0.0
        %1127 = vmatprep.subr.mxu0 0.0
        %1128 = vmatpush1.msra.mxu0 0.0
        %1129 = vmatprep.subr.mxu0 0.0
        %1130 = vmatpush1.msra.mxu0 0.0
        %1131 = vmatprep.subr.mxu0 0.0
        %1132 = vmatpush1.msra.mxu0 0.0
        %1133 = vmatprep.subr.mxu0 0.0
        %1134 = vmatpush1.msra.mxu0 0.0
        %1135 = vmatprep.subr.mxu0 0.0
        %1136 = vmatpush1.msra.mxu0 0.0
        %1137 = vmatprep.subr.mxu0 0.0
        %1138 = vmatpush1.msra.mxu0 0.0
        %1139 = vmatprep.subr.mxu0 0.0
        %1140 = vmatpush1.msra.mxu0 0.0
        %1141 = vmatprep.subr.mxu0 0.0
        %1142 = vmatpush1.msra.mxu0 0.0
        %1143 = vmatprep.mubr.f32.mxu0 0.0
        %1144 = vmatmul.mubr.f32.gmra.mrb[0].mxu0 %v1077
        %v1145 = vpop.f32.mrb[0].mxu0
        %v1146 = vadd.f32 0.0, %v1145
        %v1147 = vpop.f32.mrb[0].mxu0
        %1148 = vdwg.mxu0
        %v1150 = vsel %vm1002, %v1000, 0
        %1152 = vmatprep.subr.mxu0 0.0
        %1153 = vmatpush1.msra.mxu0 %v885
        %1154 = vmatprep.subr.mxu0 0.0
        %1155 = vmatpush1.msra.mxu0 0.0
        %1156 = vmatprep.subr.mxu0 0.0
        %1157 = vmatpush1.msra.mxu0 0.0
        %1158 = vmatprep.subr.mxu0 0.0
        %1159 = vmatpush1.msra.mxu0 0.0
        %1160 = vmatprep.subr.mxu0 0.0
        %1161 = vmatpush1.msra.mxu0 0.0
        %1162 = vmatprep.subr.mxu0 0.0
        %1163 = vmatpush1.msra.mxu0 0.0
        %1164 = vmatprep.subr.mxu0 0.0
        %1165 = vmatpush1.msra.mxu0 0.0
        %1166 = vmatprep.subr.mxu0 0.0
        %1167 = vmatpush1.msra.mxu0 0.0
        %1168 = vmatprep.subr.mxu0 0.0
        %1169 = vmatpush1.msra.mxu0 0.0
        %1170 = vmatprep.subr.mxu0 0.0
        %1171 = vmatpush1.msra.mxu0 0.0
        %1172 = vmatprep.subr.mxu0 0.0
        %1173 = vmatpush1.msra.mxu0 0.0
        %1174 = vmatprep.subr.mxu0 0.0
        %1175 = vmatpush1.msra.mxu0 0.0
        %1176 = vmatprep.subr.mxu0 0.0
        %1177 = vmatpush1.msra.mxu0 0.0
        %1178 = vmatprep.subr.mxu0 0.0
        %1179 = vmatpush1.msra.mxu0 0.0
        %1180 = vmatprep.subr.mxu0 0.0
        %1181 = vmatpush1.msra.mxu0 0.0
        %1182 = vmatprep.subr.mxu0 0.0
        %1183 = vmatpush1.msra.mxu0 0.0
        %1184 = vmatprep.subr.mxu0 0.0
        %1185 = vmatpush1.msra.mxu0 0.0
        %1186 = vmatprep.subr.mxu0 0.0
        %1187 = vmatpush1.msra.mxu0 0.0
        %1188 = vmatprep.subr.mxu0 0.0
        %1189 = vmatpush1.msra.mxu0 0.0
        %1190 = vmatprep.subr.mxu0 0.0
        %1191 = vmatpush1.msra.mxu0 0.0
        %1192 = vmatprep.subr.mxu0 0.0
        %1193 = vmatpush1.msra.mxu0 0.0
        %1194 = vmatprep.subr.mxu0 0.0
        %1195 = vmatpush1.msra.mxu0 0.0
        %1196 = vmatprep.subr.mxu0 0.0
        %1197 = vmatpush1.msra.mxu0 0.0
        %1198 = vmatprep.subr.mxu0 0.0
        %1199 = vmatpush1.msra.mxu0 0.0
        %1200 = vmatprep.subr.mxu0 0.0
        %1201 = vmatpush1.msra.mxu0 0.0
        %1202 = vmatprep.subr.mxu0 0.0
        %1203 = vmatpush1.msra.mxu0 0.0
        %1204 = vmatprep.subr.mxu0 0.0
        %1205 = vmatpush1.msra.mxu0 0.0
        %1206 = vmatprep.subr.mxu0 0.0
        %1207 = vmatpush1.msra.mxu0 0.0
        %1208 = vmatprep.subr.mxu0 0.0
        %1209 = vmatpush1.msra.mxu0 0.0
        %1210 = vmatprep.subr.mxu0 0.0
        %1211 = vmatpush1.msra.mxu0 0.0
        %1212 = vmatprep.subr.mxu0 0.0
        %1213 = vmatpush1.msra.mxu0 0.0
        %1214 = vmatprep.subr.mxu0 0.0
        %1215 = vmatpush1.msra.mxu0 0.0
        %1216 = vmatprep.mubr.f32.mxu0 0.0
        %1217 = vmatmul.mubr.f32.gmra.mrb[0].mxu0 %v1150
        %v1218 = vpop.f32.mrb[0].mxu0
        %v1219 = vadd.f32 0.0, %v1218
        %v1220 = vpop.f32.mrb[0].mxu0
        %1221 = vdwg.mxu0
        %v1223 = vsel %vm1002, %v1001, 0
        %1225 = vmatprep.subr.mxu0 0.0
        %1226 = vmatpush1.msra.mxu0 %v890
        %1227 = vmatprep.subr.mxu0 0.0
        %1228 = vmatpush1.msra.mxu0 0.0
        %1229 = vmatprep.subr.mxu0 0.0
        %1230 = vmatpush1.msra.mxu0 0.0
        %1231 = vmatprep.subr.mxu0 0.0
        %1232 = vmatpush1.msra.mxu0 0.0
        %1233 = vmatprep.subr.mxu0 0.0
        %1234 = vmatpush1.msra.mxu0 0.0
        %1235 = vmatprep.subr.mxu0 0.0
        %1236 = vmatpush1.msra.mxu0 0.0
        %1237 = vmatprep.subr.mxu0 0.0
        %1238 = vmatpush1.msra.mxu0 0.0
        %1239 = vmatprep.subr.mxu0 0.0
        %1240 = vmatpush1.msra.mxu0 0.0
        %1241 = vmatprep.subr.mxu0 0.0
        %1242 = vmatpush1.msra.mxu0 0.0
        %1243 = vmatprep.subr.mxu0 0.0
        %1244 = vmatpush1.msra.mxu0 0.0
        %1245 = vmatprep.subr.mxu0 0.0
        %1246 = vmatpush1.msra.mxu0 0.0
        %1247 = vmatprep.subr.mxu0 0.0
        %1248 = vmatpush1.msra.mxu0 0.0
        %1249 = vmatprep.subr.mxu0 0.0
        %1250 = vmatpush1.msra.mxu0 0.0
        %1251 = vmatprep.subr.mxu0 0.0
        %1252 = vmatpush1.msra.mxu0 0.0
        %1253 = vmatprep.subr.mxu0 0.0
        %1254 = vmatpush1.msra.mxu0 0.0
        %1255 = vmatprep.subr.mxu0 0.0
        %1256 = vmatpush1.msra.mxu0 0.0
        %1257 = vmatprep.subr.mxu0 0.0
        %1258 = vmatpush1.msra.mxu0 0.0
        %1259 = vmatprep.subr.mxu0 0.0
        %1260 = vmatpush1.msra.mxu0 0.0
        %1261 = vmatprep.subr.mxu0 0.0
        %1262 = vmatpush1.msra.mxu0 0.0
        %1263 = vmatprep.subr.mxu0 0.0
        %1264 = vmatpush1.msra.mxu0 0.0
        %1265 = vmatprep.subr.mxu0 0.0
        %1266 = vmatpush1.msra.mxu0 0.0
        %1267 = vmatprep.subr.mxu0 0.0
        %1268 = vmatpush1.msra.mxu0 0.0
        %1269 = vmatprep.subr.mxu0 0.0
        %1270 = vmatpush1.msra.mxu0 0.0
        %1271 = vmatprep.subr.mxu0 0.0
        %1272 = vmatpush1.msra.mxu0 0.0
        %1273 = vmatprep.subr.mxu0 0.0
        %1274 = vmatpush1.msra.mxu0 0.0
        %1275 = vmatprep.subr.mxu0 0.0
        %1276 = vmatpush1.msra.mxu0 0.0
        %1277 = vmatprep.subr.mxu0 0.0
        %1278 = vmatpush1.msra.mxu0 0.0
        %1279 = vmatprep.subr.mxu0 0.0
        %1280 = vmatpush1.msra.mxu0 0.0
        %1281 = vmatprep.subr.mxu0 0.0
        %1282 = vmatpush1.msra.mxu0 0.0
        %1283 = vmatprep.subr.mxu0 0.0
        %1284 = vmatpush1.msra.mxu0 0.0
        %1285 = vmatprep.subr.mxu0 0.0
        %1286 = vmatpush1.msra.mxu0 0.0
        %1287 = vmatprep.subr.mxu0 0.0
        %1288 = vmatpush1.msra.mxu0 0.0
        %1289 = vmatprep.mubr.f32.mxu0 0.0
        %1290 = vmatmul.mubr.f32.gmra.mrb[0].mxu0 %v1223
        %v1291 = vpop.f32.mrb[0].mxu0
        %v1292 = vadd.f32 0.0, %v1291
        %v1293 = vpop.f32.mrb[0].mxu0
        %1294 = vdwg.mxu0
        %v1295 = vld [vmem:[#allocation3] sm:$0xff]
        %v1296 = vld [vmem:[#allocation3 + $0x8] sm:$0xff]
        %v1297 = vld [vmem:[#allocation3 + $0x10] sm:$0xff]
        %v1298 = vld [vmem:[#allocation3 + $0x18] sm:$0xff]
        %vm1299 = vcmask 130048
        %v1300 = vsel %vm1299, %v1073, -inf
        %1301 = vmax.xlane.f32.xlu0 %v1300
        %v1302 = vpop.xlane.xlu0 %1301
        %v1303 = vsel %vm1299, %v1146, -inf
        %1304 = vmax.xlane.f32.xlu0 %v1303
        %v1305 = vpop.xlane.xlu0 %1304
        %v1306 = vsel %vm1299, %v1219, -inf
        %1307 = vmax.xlane.f32.xlu0 %v1306
        %v1308 = vpop.xlane.xlu0 %1307
        %v1309 = vsel %vm1299, %v1292, -inf
        %1310 = vmax.xlane.f32.xlu0 %v1309
        %v1311 = vpop.xlane.xlu0 %1310
        %v1312 = vmax.f32 %v1295, %v1302
        %v1313 = vmax.f32 %v1296, %v1305
        %v1314 = vmax.f32 %v1297, %v1308
        %v1315 = vmax.f32 %v1298, %v1311
        %v1316 = vsub.f32 %v1295, %v1312
        %v1317 = vsub.f32 %v1296, %v1313
        %v1318 = vsub.f32 %v1297, %v1314
        %v1319 = vsub.f32 %v1298, %v1315
        %v1320 = vmul.f32 %v1316, 1.442695
        %v1321 = vpow.pop %v1320
        %v1322 = vmul.f32 %v1317, 1.442695
        %v1323 = vpow.pop %v1322
        %v1324 = vmul.f32 %v1318, 1.442695
        %v1325 = vpow.pop %v1324
        %v1326 = vmul.f32 %v1319, 1.442695
        %v1327 = vpow.pop %v1326
        %1329 = vset.pattern.permute.xlu0 0
        %1330 = vperm.xlu0 %1329, %v1312
        %v1331 = vpop.permute.xlu0 %1330
        %1334 = vset.pattern.permute.xlu0 0
        %1335 = vperm.xlu0 %1334, %v1313
        %v1336 = vpop.permute.xlu0 %1335
        %1339 = vset.pattern.permute.xlu0 0
        %1340 = vperm.xlu0 %1339, %v1314
        %v1341 = vpop.permute.xlu0 %1340
        %1344 = vset.pattern.permute.xlu0 0
        %1345 = vperm.xlu0 %1344, %v1315
        %v1346 = vpop.permute.xlu0 %1345
        %v1348 = vsub.f32 %v1073, %v1331
        %v1349 = vsub.f32 %v1146, %v1336
        %v1350 = vsub.f32 %v1219, %v1341
        %v1351 = vsub.f32 %v1292, %v1346
        %v1352 = vmul.f32 %v1348, 1.442695
        %v1353 = vpow.pop %v1352
        %v1354 = vmul.f32 %v1349, 1.442695
        %v1355 = vpow.pop %v1354
        %v1356 = vmul.f32 %v1350, 1.442695
        %v1357 = vpow.pop %v1356
        %v1358 = vmul.f32 %v1351, 1.442695
        %v1359 = vpow.pop %v1358
        %v1360 = vld [vmem:[#allocation4] sm:$0xff]
        %v1361 = vld [vmem:[#allocation4 + $0x8] sm:$0xff]
        %v1362 = vld [vmem:[#allocation4 + $0x10] sm:$0xff]
        %v1363 = vld [vmem:[#allocation4 + $0x18] sm:$0xff]
        %v1364 = vmul.f32 %v1321, %v1360
        %v1365 = vmul.f32 %v1323, %v1361
        %v1366 = vmul.f32 %v1325, %v1362
        %v1367 = vmul.f32 %v1327, %v1363
        %v1368 = vsel %vm1299, %v1353, 0.0
        %1369 = vadd.xlane.f32.xlu0 %v1368
        %v1370 = vpop.xlane.xlu0 %1369
        %v1371 = vsel %vm1299, %v1355, 0.0
        %1372 = vadd.xlane.f32.xlu0 %v1371
        %v1373 = vpop.xlane.xlu0 %1372
        %v1374 = vsel %vm1299, %v1357, 0.0
        %1375 = vadd.xlane.f32.xlu0 %v1374
        %v1376 = vpop.xlane.xlu0 %1375
        %v1377 = vsel %vm1299, %v1359, 0.0
        %1378 = vadd.xlane.f32.xlu0 %v1377
        %v1379 = vpop.xlane.xlu0 %1378
        %v1380 = vadd.f32 %v1364, %v1370
        %v1381 = vadd.f32 %v1365, %v1373
        %v1382 = vadd.f32 %v1366, %v1376
        %v1383 = vadd.f32 %v1367, %v1379
        %vm1384 = vcmask 7168
        %1385 = vst.msk [vmem:[#allocation4] sm:$0xff] %vm1384, %v1380
        %1386 = vst.msk [vmem:[#allocation4 + $0x8] sm:$0xff] %vm1384, %v1381
        %1387 = vst.msk [vmem:[#allocation4 + $0x10] sm:$0xff] %vm1384, %v1382
        %1388 = vst.msk [vmem:[#allocation4 + $0x18] sm:$0xff] %vm1384, %v1383
        %v1390 = vsel %vm1299, %v1353, 0
        %v1393 = vsel %vm1299, %v980, 0
        %1395 = vmatprep.subr.mxu0 0.0
        %1396 = vmatpush1.xpose.msra.mxu0 %v1393
        %1397 = vmatprep.subr.mxu0 0.0
        %1398 = vmatpush1.xpose.msra.mxu0 0.0
        %1399 = vmatprep.subr.mxu0 0.0
        %1400 = vmatpush1.xpose.msra.mxu0 0.0
        %1401 = vmatprep.subr.mxu0 0.0
        %1402 = vmatpush1.xpose.msra.mxu0 0.0
        %1403 = vmatprep.subr.mxu0 0.0
        %1404 = vmatpush1.xpose.msra.mxu0 0.0
        %1405 = vmatprep.subr.mxu0 0.0
        %1406 = vmatpush1.xpose.msra.mxu0 0.0
        %1407 = vmatprep.subr.mxu0 0.0
        %1408 = vmatpush1.xpose.msra.mxu0 0.0
        %1409 = vmatprep.subr.mxu0 0.0
        %1410 = vmatpush1.xpose.msra.mxu0 0.0
        %1411 = vmatprep.subr.mxu0 0.0
        %1412 = vmatpush1.xpose.msra.mxu0 0.0
        %1413 = vmatprep.subr.mxu0 0.0
        %1414 = vmatpush1.xpose.msra.mxu0 0.0
        %1415 = vmatprep.subr.mxu0 0.0
        %1416 = vmatpush1.xpose.msra.mxu0 0.0
        %1417 = vmatprep.subr.mxu0 0.0
        %1418 = vmatpush1.xpose.msra.mxu0 0.0
        %1419 = vmatprep.subr.mxu0 0.0
        %1420 = vmatpush1.xpose.msra.mxu0 0.0
        %1421 = vmatprep.subr.mxu0 0.0
        %1422 = vmatpush1.xpose.msra.mxu0 0.0
        %1423 = vmatprep.subr.mxu0 0.0
        %1424 = vmatpush1.xpose.msra.mxu0 0.0
        %1425 = vmatprep.subr.mxu0 0.0
        %1426 = vmatpush1.xpose.msra.mxu0 0.0
        %1427 = vmatprep.subr.mxu0 0.0
        %1428 = vmatpush1.xpose.msra.mxu0 0.0
        %1429 = vmatprep.subr.mxu0 0.0
        %1430 = vmatpush1.xpose.msra.mxu0 0.0
        %1431 = vmatprep.subr.mxu0 0.0
        %1432 = vmatpush1.xpose.msra.mxu0 0.0
        %1433 = vmatprep.subr.mxu0 0.0
        %1434 = vmatpush1.xpose.msra.mxu0 0.0
        %1435 = vmatprep.subr.mxu0 0.0
        %1436 = vmatpush1.xpose.msra.mxu0 0.0
        %1437 = vmatprep.subr.mxu0 0.0
        %1438 = vmatpush1.xpose.msra.mxu0 0.0
        %1439 = vmatprep.subr.mxu0 0.0
        %1440 = vmatpush1.xpose.msra.mxu0 0.0
        %1441 = vmatprep.subr.mxu0 0.0
        %1442 = vmatpush1.xpose.msra.mxu0 0.0
        %1443 = vmatprep.subr.mxu0 0.0
        %1444 = vmatpush1.xpose.msra.mxu0 0.0
        %1445 = vmatprep.subr.mxu0 0.0
        %1446 = vmatpush1.xpose.msra.mxu0 0.0
        %1447 = vmatprep.subr.mxu0 0.0
        %1448 = vmatpush1.xpose.msra.mxu0 0.0
        %1449 = vmatprep.subr.mxu0 0.0
        %1450 = vmatpush1.xpose.msra.mxu0 0.0
        %1451 = vmatprep.subr.mxu0 0.0
        %1452 = vmatpush1.xpose.msra.mxu0 0.0
        %1453 = vmatprep.subr.mxu0 0.0
        %1454 = vmatpush1.xpose.msra.mxu0 0.0
        %1455 = vmatprep.subr.mxu0 0.0
        %1456 = vmatpush1.xpose.msra.mxu0 0.0
        %1457 = vmatprep.subr.mxu0 0.0
        %1458 = vmatpush1.xpose.msra.mxu0 0.0
        %1459 = vmatprep.mubr.f32.mxu0 0.0
        %1460 = vmatmul.mubr.f32.gmra.mrb[0].mxu0 %v1390
        %v1461 = vpop.f32.mrb[0].mxu0
        %v1462 = vadd.f32 0.0, %v1461
        %v1463 = vpop.f32.mrb[0].mxu0
        %1464 = vdwg.mxu0
        %v1466 = vsel %vm1299, %v1355, 0
        %v1469 = vsel %vm1299, %v985, 0
        %1471 = vmatprep.subr.mxu0 0.0
        %1472 = vmatpush1.xpose.msra.mxu0 %v1469
        %1473 = vmatprep.subr.mxu0 0.0
        %1474 = vmatpush1.xpose.msra.mxu0 0.0
        %1475 = vmatprep.subr.mxu0 0.0
        %1476 = vmatpush1.xpose.msra.mxu0 0.0
        %1477 = vmatprep.subr.mxu0 0.0
        %1478 = vmatpush1.xpose.msra.mxu0 0.0
        %1479 = vmatprep.subr.mxu0 0.0
        %1480 = vmatpush1.xpose.msra.mxu0 0.0
        %1481 = vmatprep.subr.mxu0 0.0
        %1482 = vmatpush1.xpose.msra.mxu0 0.0
        %1483 = vmatprep.subr.mxu0 0.0
        %1484 = vmatpush1.xpose.msra.mxu0 0.0
        %1485 = vmatprep.subr.mxu0 0.0
        %1486 = vmatpush1.xpose.msra.mxu0 0.0
        %1487 = vmatprep.subr.mxu0 0.0
        %1488 = vmatpush1.xpose.msra.mxu0 0.0
        %1489 = vmatprep.subr.mxu0 0.0
        %1490 = vmatpush1.xpose.msra.mxu0 0.0
        %1491 = vmatprep.subr.mxu0 0.0
        %1492 = vmatpush1.xpose.msra.mxu0 0.0
        %1493 = vmatprep.subr.mxu0 0.0
        %1494 = vmatpush1.xpose.msra.mxu0 0.0
        %1495 = vmatprep.subr.mxu0 0.0
        %1496 = vmatpush1.xpose.msra.mxu0 0.0
        %1497 = vmatprep.subr.mxu0 0.0
        %1498 = vmatpush1.xpose.msra.mxu0 0.0
        %1499 = vmatprep.subr.mxu0 0.0
        %1500 = vmatpush1.xpose.msra.mxu0 0.0
        %1501 = vmatprep.subr.mxu0 0.0
        %1502 = vmatpush1.xpose.msra.mxu0 0.0
        %1503 = vmatprep.subr.mxu0 0.0
        %1504 = vmatpush1.xpose.msra.mxu0 0.0
        %1505 = vmatprep.subr.mxu0 0.0
        %1506 = vmatpush1.xpose.msra.mxu0 0.0
        %1507 = vmatprep.subr.mxu0 0.0
        %1508 = vmatpush1.xpose.msra.mxu0 0.0
        %1509 = vmatprep.subr.mxu0 0.0
        %1510 = vmatpush1.xpose.msra.mxu0 0.0
        %1511 = vmatprep.subr.mxu0 0.0
        %1512 = vmatpush1.xpose.msra.mxu0 0.0
        %1513 = vmatprep.subr.mxu0 0.0
        %1514 = vmatpush1.xpose.msra.mxu0 0.0
        %1515 = vmatprep.subr.mxu0 0.0
        %1516 = vmatpush1.xpose.msra.mxu0 0.0
        %1517 = vmatprep.subr.mxu0 0.0
        %1518 = vmatpush1.xpose.msra.mxu0 0.0
        %1519 = vmatprep.subr.mxu0 0.0
        %1520 = vmatpush1.xpose.msra.mxu0 0.0
        %1521 = vmatprep.subr.mxu0 0.0
        %1522 = vmatpush1.xpose.msra.mxu0 0.0
        %1523 = vmatprep.subr.mxu0 0.0
        %1524 = vmatpush1.xpose.msra.mxu0 0.0
        %1525 = vmatprep.subr.mxu0 0.0
        %1526 = vmatpush1.xpose.msra.mxu0 0.0
        %1527 = vmatprep.subr.mxu0 0.0
        %1528 = vmatpush1.xpose.msra.mxu0 0.0
        %1529 = vmatprep.subr.mxu0 0.0
        %1530 = vmatpush1.xpose.msra.mxu0 0.0
        %1531 = vmatprep.subr.mxu0 0.0
        %1532 = vmatpush1.xpose.msra.mxu0 0.0
        %1533 = vmatprep.subr.mxu0 0.0
        %1534 = vmatpush1.xpose.msra.mxu0 0.0
        %1535 = vmatprep.mubr.f32.mxu0 0.0
        %1536 = vmatmul.mubr.f32.gmra.mrb[0].mxu0 %v1466
        %v1537 = vpop.f32.mrb[0].mxu0
        %v1538 = vadd.f32 0.0, %v1537
        %v1539 = vpop.f32.mrb[0].mxu0
        %1540 = vdwg.mxu0
        %v1542 = vsel %vm1299, %v1357, 0
        %v1545 = vsel %vm1299, %v990, 0
        %1547 = vmatprep.subr.mxu0 0.0
        %1548 = vmatpush1.xpose.msra.mxu0 %v1545
        %1549 = vmatprep.subr.mxu0 0.0
        %1550 = vmatpush1.xpose.msra.mxu0 0.0
        %1551 = vmatprep.subr.mxu0 0.0
        %1552 = vmatpush1.xpose.msra.mxu0 0.0
        %1553 = vmatprep.subr.mxu0 0.0
        %1554 = vmatpush1.xpose.msra.mxu0 0.0
        %1555 = vmatprep.subr.mxu0 0.0
        %1556 = vmatpush1.xpose.msra.mxu0 0.0
        %1557 = vmatprep.subr.mxu0 0.0
        %1558 = vmatpush1.xpose.msra.mxu0 0.0
        %1559 = vmatprep.subr.mxu0 0.0
        %1560 = vmatpush1.xpose.msra.mxu0 0.0
        %1561 = vmatprep.subr.mxu0 0.0
        %1562 = vmatpush1.xpose.msra.mxu0 0.0
        %1563 = vmatprep.subr.mxu0 0.0
        %1564 = vmatpush1.xpose.msra.mxu0 0.0
        %1565 = vmatprep.subr.mxu0 0.0
        %1566 = vmatpush1.xpose.msra.mxu0 0.0
        %1567 = vmatprep.subr.mxu0 0.0
        %1568 = vmatpush1.xpose.msra.mxu0 0.0
        %1569 = vmatprep.subr.mxu0 0.0
        %1570 = vmatpush1.xpose.msra.mxu0 0.0
        %1571 = vmatprep.subr.mxu0 0.0
        %1572 = vmatpush1.xpose.msra.mxu0 0.0
        %1573 = vmatprep.subr.mxu0 0.0
        %1574 = vmatpush1.xpose.msra.mxu0 0.0
        %1575 = vmatprep.subr.mxu0 0.0
        %1576 = vmatpush1.xpose.msra.mxu0 0.0
        %1577 = vmatprep.subr.mxu0 0.0
        %1578 = vmatpush1.xpose.msra.mxu0 0.0
        %1579 = vmatprep.subr.mxu0 0.0
        %1580 = vmatpush1.xpose.msra.mxu0 0.0
        %1581 = vmatprep.subr.mxu0 0.0
        %1582 = vmatpush1.xpose.msra.mxu0 0.0
        %1583 = vmatprep.subr.mxu0 0.0
        %1584 = vmatpush1.xpose.msra.mxu0 0.0
        %1585 = vmatprep.subr.mxu0 0.0
        %1586 = vmatpush1.xpose.msra.mxu0 0.0
        %1587 = vmatprep.subr.mxu0 0.0
        %1588 = vmatpush1.xpose.msra.mxu0 0.0
        %1589 = vmatprep.subr.mxu0 0.0
        %1590 = vmatpush1.xpose.msra.mxu0 0.0
        %1591 = vmatprep.subr.mxu0 0.0
        %1592 = vmatpush1.xpose.msra.mxu0 0.0
        %1593 = vmatprep.subr.mxu0 0.0
        %1594 = vmatpush1.xpose.msra.mxu0 0.0
        %1595 = vmatprep.subr.mxu0 0.0
        %1596 = vmatpush1.xpose.msra.mxu0 0.0
        %1597 = vmatprep.subr.mxu0 0.0
        %1598 = vmatpush1.xpose.msra.mxu0 0.0
        %1599 = vmatprep.subr.mxu0 0.0
        %1600 = vmatpush1.xpose.msra.mxu0 0.0
        %1601 = vmatprep.subr.mxu0 0.0
        %1602 = vmatpush1.xpose.msra.mxu0 0.0
        %1603 = vmatprep.subr.mxu0 0.0
        %1604 = vmatpush1.xpose.msra.mxu0 0.0
        %1605 = vmatprep.subr.mxu0 0.0
        %1606 = vmatpush1.xpose.msra.mxu0 0.0
        %1607 = vmatprep.subr.mxu0 0.0
        %1608 = vmatpush1.xpose.msra.mxu0 0.0
        %1609 = vmatprep.subr.mxu0 0.0
        %1610 = vmatpush1.xpose.msra.mxu0 0.0
        %1611 = vmatprep.mubr.f32.mxu0 0.0
        %1612 = vmatmul.mubr.f32.gmra.mrb[0].mxu0 %v1542
        %v1613 = vpop.f32.mrb[0].mxu0
        %v1614 = vadd.f32 0.0, %v1613
        %v1615 = vpop.f32.mrb[0].mxu0
        %1616 = vdwg.mxu0
        %v1618 = vsel %vm1299, %v1359, 0
        %v1621 = vsel %vm1299, %v995, 0
        %1623 = vmatprep.subr.mxu0 0.0
        %1624 = vmatpush1.xpose.msra.mxu0 %v1621
        %1625 = vmatprep.subr.mxu0 0.0
        %1626 = vmatpush1.xpose.msra.mxu0 0.0
        %1627 = vmatprep.subr.mxu0 0.0
        %1628 = vmatpush1.xpose.msra.mxu0 0.0
        %1629 = vmatprep.subr.mxu0 0.0
        %1630 = vmatpush1.xpose.msra.mxu0 0.0
        %1631 = vmatprep.subr.mxu0 0.0
        %1632 = vmatpush1.xpose.msra.mxu0 0.0
        %1633 = vmatprep.subr.mxu0 0.0
        %1634 = vmatpush1.xpose.msra.mxu0 0.0
        %1635 = vmatprep.subr.mxu0 0.0
        %1636 = vmatpush1.xpose.msra.mxu0 0.0
        %1637 = vmatprep.subr.mxu0 0.0
        %1638 = vmatpush1.xpose.msra.mxu0 0.0
        %1639 = vmatprep.subr.mxu0 0.0
        %1640 = vmatpush1.xpose.msra.mxu0 0.0
        %1641 = vmatprep.subr.mxu0 0.0
        %1642 = vmatpush1.xpose.msra.mxu0 0.0
        %1643 = vmatprep.subr.mxu0 0.0
        %1644 = vmatpush1.xpose.msra.mxu0 0.0
        %1645 = vmatprep.subr.mxu0 0.0
        %1646 = vmatpush1.xpose.msra.mxu0 0.0
        %1647 = vmatprep.subr.mxu0 0.0
        %1648 = vmatpush1.xpose.msra.mxu0 0.0
        %1649 = vmatprep.subr.mxu0 0.0
        %1650 = vmatpush1.xpose.msra.mxu0 0.0
        %1651 = vmatprep.subr.mxu0 0.0
        %1652 = vmatpush1.xpose.msra.mxu0 0.0
        %1653 = vmatprep.subr.mxu0 0.0
        %1654 = vmatpush1.xpose.msra.mxu0 0.0
        %1655 = vmatprep.subr.mxu0 0.0
        %1656 = vmatpush1.xpose.msra.mxu0 0.0
        %1657 = vmatprep.subr.mxu0 0.0
        %1658 = vmatpush1.xpose.msra.mxu0 0.0
        %1659 = vmatprep.subr.mxu0 0.0
        %1660 = vmatpush1.xpose.msra.mxu0 0.0
        %1661 = vmatprep.subr.mxu0 0.0
        %1662 = vmatpush1.xpose.msra.mxu0 0.0
        %1663 = vmatprep.subr.mxu0 0.0
        %1664 = vmatpush1.xpose.msra.mxu0 0.0
        %1665 = vmatprep.subr.mxu0 0.0
        %1666 = vmatpush1.xpose.msra.mxu0 0.0
        %1667 = vmatprep.subr.mxu0 0.0
        %1668 = vmatpush1.xpose.msra.mxu0 0.0
        %1669 = vmatprep.subr.mxu0 0.0
        %1670 = vmatpush1.xpose.msra.mxu0 0.0
        %1671 = vmatprep.subr.mxu0 0.0
        %1672 = vmatpush1.xpose.msra.mxu0 0.0
        %1673 = vmatprep.subr.mxu0 0.0
        %1674 = vmatpush1.xpose.msra.mxu0 0.0
        %1675 = vmatprep.subr.mxu0 0.0
        %1676 = vmatpush1.xpose.msra.mxu0 0.0
        %1677 = vmatprep.subr.mxu0 0.0
        %1678 = vmatpush1.xpose.msra.mxu0 0.0
        %1679 = vmatprep.subr.mxu0 0.0
        %1680 = vmatpush1.xpose.msra.mxu0 0.0
        %1681 = vmatprep.subr.mxu0 0.0
        %1682 = vmatpush1.xpose.msra.mxu0 0.0
        %1683 = vmatprep.subr.mxu0 0.0
        %1684 = vmatpush1.xpose.msra.mxu0 0.0
        %1685 = vmatprep.subr.mxu0 0.0
        %1686 = vmatpush1.xpose.msra.mxu0 0.0
        %1687 = vmatprep.mubr.f32.mxu0 0.0
        %1688 = vmatmul.mubr.f32.gmra.mrb[0].mxu0 %v1618
        %v1689 = vpop.f32.mrb[0].mxu0
        %v1690 = vadd.f32 0.0, %v1689
        %v1691 = vpop.f32.mrb[0].mxu0
        %1692 = vdwg.mxu0
        %v1693 = vld [vmem:[#allocation5] sm:$0xff]
        %v1694 = vld [vmem:[#allocation5 + $0x8] sm:$0xff]
        %v1695 = vld [vmem:[#allocation5 + $0x10] sm:$0xff]
        %v1696 = vld [vmem:[#allocation5 + $0x18] sm:$0xff]
        %1698 = vset.pattern.permute.xlu0 0
        %1699 = vperm.xlu0 %1698, %v1321
        %v1700 = vpop.permute.xlu0 %1699
        %1703 = vset.pattern.permute.xlu0 0
        %1704 = vperm.xlu0 %1703, %v1323
        %v1705 = vpop.permute.xlu0 %1704
        %1708 = vset.pattern.permute.xlu0 0
        %1709 = vperm.xlu0 %1708, %v1325
        %v1710 = vpop.permute.xlu0 %1709
        %1713 = vset.pattern.permute.xlu0 0
        %1714 = vperm.xlu0 %1713, %v1327
        %v1715 = vpop.permute.xlu0 %1714
        %v1717 = vmul.f32 %v1700, %v1693
        %v1718 = vmul.f32 %v1705, %v1694
        %v1719 = vmul.f32 %v1710, %v1695
        %v1720 = vmul.f32 %v1715, %v1696
        %v1721 = vadd.f32 %v1717, %v1462
        %v1722 = vadd.f32 %v1718, %v1538
        %v1723 = vadd.f32 %v1719, %v1614
        %v1724 = vadd.f32 %v1720, %v1690
        %1725 = vst.msk [vmem:[#allocation5] sm:$0xff] %vm1002, %v1721
        %1726 = vst.msk [vmem:[#allocation5 + $0x8] sm:$0xff] %vm1002, %v1722
        %1727 = vst.msk [vmem:[#allocation5 + $0x10] sm:$0xff] %vm1002, %v1723
        %1728 = vst.msk [vmem:[#allocation5 + $0x18] sm:$0xff] %vm1002, %v1724
        %1729 = vst.msk [vmem:[#allocation3] sm:$0xff] %vm1384, %v1312
        %1730 = vst.msk [vmem:[#allocation3 + $0x8] sm:$0xff] %vm1384, %v1313
        %1731 = vst.msk [vmem:[#allocation3 + $0x10] sm:$0xff] %vm1384, %v1314
        %1732 = vst.msk [vmem:[#allocation3 + $0x18] sm:$0xff] %vm1384, %v1315
        // Predicated region
        $region73: #{tpu_custom_call.1} parent=67 // pred_check
          %p1733 = pneg %p503
        $region74: #{tpu_custom_call.1} parent=67 // pred_check_branch
          %1735 = sbr.rel (%p1733) target = $region76
        $region75: #{tpu_custom_call.1} parent=67 // pred_region
          %v1736 = vld [vmem:[#allocation4] sm:$0xff]
          %v1737 = vrcp.pop %v1736
          %v1738 = vmul.f32 %v1736, %v1737
          %v1739 = vsub.f32 2.0, %v1738
          %v1740 = vmul.f32 %v1737, %v1739
          %v1741 = vld [vmem:[#allocation5] sm:$0xff]
          %1743 = vset.pattern.permute.xlu0 0
          %1744 = vperm.xlu0 %1743, %v1740
          %v1745 = vpop.permute.xlu0 %1744
          %v1747 = vmul.f32 %v1741, %v1745
          %v1748 = vld [vmem:[%s7] sm:$0xff]
          %s1749 = scalar_lea.vmem [#allocation4], 8
          %v1750 = vld [vmem:[%s1749] sm:$0xff]
          %v1751 = vrcp.pop %v1750
          %v1752 = vmul.f32 %v1750, %v1751
          %v1753 = vsub.f32 2.0, %v1752
          %v1754 = vmul.f32 %v1751, %v1753
          %s1755 = scalar_lea.vmem [#allocation5], 8
          %v1756 = vld [vmem:[%s1755] sm:$0xff]
          %1758 = vset.pattern.permute.xlu0 0
          %1759 = vperm.xlu0 %1758, %v1754
          %v1760 = vpop.permute.xlu0 %1759
          %v1762 = vmul.f32 %v1756, %v1760
          %v1763 = vld [vmem:[%s7 + $0x8] sm:$0xff]
          %v1765 = vsel %vm1002, %v1762, 0
          %1767 = vmatprep.subr.mxu0 0.0
          %1768 = vmatpush1.msra.mxu0 %v1763
          %1769 = vmatprep.subr.mxu0 0.0
          %1770 = vmatpush1.msra.mxu0 0.0
          %1771 = vmatprep.subr.mxu0 0.0
          %1772 = vmatpush1.msra.mxu0 0.0
          %1773 = vmatprep.subr.mxu0 0.0
          %1774 = vmatpush1.msra.mxu0 0.0
          %1775 = vmatprep.subr.mxu0 0.0
          %1776 = vmatpush1.msra.mxu0 0.0
          %1777 = vmatprep.subr.mxu0 0.0
          %1778 = vmatpush1.msra.mxu0 0.0
          %1779 = vmatprep.subr.mxu0 0.0
          %1780 = vmatpush1.msra.mxu0 0.0
          %1781 = vmatprep.subr.mxu0 0.0
          %1782 = vmatpush1.msra.mxu0 0.0
          %1783 = vmatprep.subr.mxu0 0.0
          %1784 = vmatpush1.msra.mxu0 0.0
          %1785 = vmatprep.subr.mxu0 0.0
          %1786 = vmatpush1.msra.mxu0 0.0
          %1787 = vmatprep.subr.mxu0 0.0
          %1788 = vmatpush1.msra.mxu0 0.0
          %1789 = vmatprep.subr.mxu0 0.0
          %1790 = vmatpush1.msra.mxu0 0.0
          %1791 = vmatprep.subr.mxu0 0.0
          %1792 = vmatpush1.msra.mxu0 0.0
          %1793 = vmatprep.subr.mxu0 0.0
          %1794 = vmatpush1.msra.mxu0 0.0
          %1795 = vmatprep.subr.mxu0 0.0
          %1796 = vmatpush1.msra.mxu0 0.0
          %1797 = vmatprep.subr.mxu0 0.0
          %1798 = vmatpush1.msra.mxu0 0.0
          %1799 = vmatprep.subr.mxu0 0.0
          %1800 = vmatpush1.msra.mxu0 0.0
          %1801 = vmatprep.subr.mxu0 0.0
          %1802 = vmatpush1.msra.mxu0 0.0
          %1803 = vmatprep.subr.mxu0 0.0
          %1804 = vmatpush1.msra.mxu0 0.0
          %1805 = vmatprep.subr.mxu0 0.0
          %1806 = vmatpush1.msra.mxu0 0.0
          %1807 = vmatprep.subr.mxu0 0.0
          %1808 = vmatpush1.msra.mxu0 0.0
          %1809 = vmatprep.subr.mxu0 0.0
          %1810 = vmatpush1.msra.mxu0 0.0
          %1811 = vmatprep.subr.mxu0 0.0
          %1812 = vmatpush1.msra.mxu0 0.0
          %1813 = vmatprep.subr.mxu0 0.0
          %1814 = vmatpush1.msra.mxu0 0.0
          %1815 = vmatprep.subr.mxu0 0.0
          %1816 = vmatpush1.msra.mxu0 0.0
          %1817 = vmatprep.subr.mxu0 0.0
          %1818 = vmatpush1.msra.mxu0 0.0
          %1819 = vmatprep.subr.mxu0 0.0
          %1820 = vmatpush1.msra.mxu0 0.0
          %1821 = vmatprep.subr.mxu0 0.0
          %1822 = vmatpush1.msra.mxu0 0.0
          %1823 = vmatprep.subr.mxu0 0.0
          %1824 = vmatpush1.msra.mxu0 0.0
          %1825 = vmatprep.subr.mxu0 0.0
          %1826 = vmatpush1.msra.mxu0 0.0
          %1827 = vmatprep.subr.mxu0 0.0
          %1828 = vmatpush1.msra.mxu0 0.0
          %1829 = vmatprep.subr.mxu0 0.0
          %1830 = vmatpush1.msra.mxu0 0.0
          %1831 = vmatprep.mubr.f32.mxu0 0.0
          %1832 = vmatmul.mubr.f32.gmra.mrb[0].mxu0 %v1765
          %v1833 = vpop.f32.mrb[0].mxu0
          %v1834 = vadd.f32 0.0, %v1833
          %v1835 = vpop.f32.mrb[0].mxu0
          %1836 = vdwg.mxu0
          %v1838 = vsel %vm1002, %v1747, 0
          %1840 = vmatprep.subr.mxu0 0.0
          %1841 = vmatpush1.msra.mxu0 %v1748
          %1842 = vmatprep.subr.mxu0 0.0
          %1843 = vmatpush1.msra.mxu0 0.0
          %1844 = vmatprep.subr.mxu0 0.0
          %1845 = vmatpush1.msra.mxu0 0.0
          %1846 = vmatprep.subr.mxu0 0.0
          %1847 = vmatpush1.msra.mxu0 0.0
          %1848 = vmatprep.subr.mxu0 0.0
          %1849 = vmatpush1.msra.mxu0 0.0
          %1850 = vmatprep.subr.mxu0 0.0
          %1851 = vmatpush1.msra.mxu0 0.0
          %1852 = vmatprep.subr.mxu0 0.0
          %1853 = vmatpush1.msra.mxu0 0.0
          %1854 = vmatprep.subr.mxu0 0.0
          %1855 = vmatpush1.msra.mxu0 0.0
          %1856 = vmatprep.subr.mxu0 0.0
          %1857 = vmatpush1.msra.mxu0 0.0
          %1858 = vmatprep.subr.mxu0 0.0
          %1859 = vmatpush1.msra.mxu0 0.0
          %1860 = vmatprep.subr.mxu0 0.0
          %1861 = vmatpush1.msra.mxu0 0.0
          %1862 = vmatprep.subr.mxu0 0.0
          %1863 = vmatpush1.msra.mxu0 0.0
          %1864 = vmatprep.subr.mxu0 0.0
          %1865 = vmatpush1.msra.mxu0 0.0
          %1866 = vmatprep.subr.mxu0 0.0
          %1867 = vmatpush1.msra.mxu0 0.0
          %1868 = vmatprep.subr.mxu0 0.0
          %1869 = vmatpush1.msra.mxu0 0.0
          %1870 = vmatprep.subr.mxu0 0.0
          %1871 = vmatpush1.msra.mxu0 0.0
          %1872 = vmatprep.subr.mxu0 0.0
          %1873 = vmatpush1.msra.mxu0 0.0
          %1874 = vmatprep.subr.mxu0 0.0
          %1875 = vmatpush1.msra.mxu0 0.0
          %1876 = vmatprep.subr.mxu0 0.0
          %1877 = vmatpush1.msra.mxu0 0.0
          %1878 = vmatprep.subr.mxu0 0.0
          %1879 = vmatpush1.msra.mxu0 0.0
          %1880 = vmatprep.subr.mxu0 0.0
          %1881 = vmatpush1.msra.mxu0 0.0
          %1882 = vmatprep.subr.mxu0 0.0
          %1883 = vmatpush1.msra.mxu0 0.0
          %1884 = vmatprep.subr.mxu0 0.0
          %1885 = vmatpush1.msra.mxu0 0.0
          %1886 = vmatprep.subr.mxu0 0.0
          %1887 = vmatpush1.msra.mxu0 0.0
          %1888 = vmatprep.subr.mxu0 0.0
          %1889 = vmatpush1.msra.mxu0 0.0
          %1890 = vmatprep.subr.mxu0 0.0
          %1891 = vmatpush1.msra.mxu0 0.0
          %1892 = vmatprep.subr.mxu0 0.0
          %1893 = vmatpush1.msra.mxu0 0.0
          %1894 = vmatprep.subr.mxu0 0.0
          %1895 = vmatpush1.msra.mxu0 0.0
          %1896 = vmatprep.subr.mxu0 0.0
          %1897 = vmatpush1.msra.mxu0 0.0
          %1898 = vmatprep.subr.mxu0 0.0
          %1899 = vmatpush1.msra.mxu0 0.0
          %1900 = vmatprep.subr.mxu0 0.0
          %1901 = vmatpush1.msra.mxu0 0.0
          %1902 = vmatprep.subr.mxu0 0.0
          %1903 = vmatpush1.msra.mxu0 0.0
          %1904 = vmatprep.mubr.f32.mxu0 0.0
          %1905 = vmatmul.mubr.f32.gmra.mrb[0].mxu0 %v1838
          %v1906 = vpop.f32.mrb[0].mxu0
          %v1907 = vadd.f32 %v1834, %v1906
          %v1908 = vpop.f32.mrb[0].mxu0
          %1909 = vdwg.mxu0
          %s1910 = scalar_lea.vmem [#allocation4], 16
          %v1911 = vld [vmem:[%s1910] sm:$0xff]
          %v1912 = vrcp.pop %v1911
          %v1913 = vmul.f32 %v1911, %v1912
          %v1914 = vsub.f32 2.0, %v1913
          %v1915 = vmul.f32 %v1912, %v1914
          %s1916 = scalar_lea.vmem [#allocation5], 16
          %v1917 = vld [vmem:[%s1916] sm:$0xff]
          %1919 = vset.pattern.permute.xlu0 0
          %1920 = vperm.xlu0 %1919, %v1915
          %v1921 = vpop.permute.xlu0 %1920
          %v1923 = vmul.f32 %v1917, %v1921
          %v1924 = vld [vmem:[%s7 + $0x10] sm:$0xff]
          %v1926 = vsel %vm1002, %v1923, 0
          %1928 = vmatprep.subr.mxu0 0.0
          %1929 = vmatpush1.msra.mxu0 %v1924
          %1930 = vmatprep.subr.mxu0 0.0
          %1931 = vmatpush1.msra.mxu0 0.0
          %1932 = vmatprep.subr.mxu0 0.0
          %1933 = vmatpush1.msra.mxu0 0.0
          %1934 = vmatprep.subr.mxu0 0.0
          %1935 = vmatpush1.msra.mxu0 0.0
          %1936 = vmatprep.subr.mxu0 0.0
          %1937 = vmatpush1.msra.mxu0 0.0
          %1938 = vmatprep.subr.mxu0 0.0
          %1939 = vmatpush1.msra.mxu0 0.0
          %1940 = vmatprep.subr.mxu0 0.0
          %1941 = vmatpush1.msra.mxu0 0.0
          %1942 = vmatprep.subr.mxu0 0.0
          %1943 = vmatpush1.msra.mxu0 0.0
          %1944 = vmatprep.subr.mxu0 0.0
          %1945 = vmatpush1.msra.mxu0 0.0
          %1946 = vmatprep.subr.mxu0 0.0
          %1947 = vmatpush1.msra.mxu0 0.0
          %1948 = vmatprep.subr.mxu0 0.0
          %1949 = vmatpush1.msra.mxu0 0.0
          %1950 = vmatprep.subr.mxu0 0.0
          %1951 = vmatpush1.msra.mxu0 0.0
          %1952 = vmatprep.subr.mxu0 0.0
          %1953 = vmatpush1.msra.mxu0 0.0
          %1954 = vmatprep.subr.mxu0 0.0
          %1955 = vmatpush1.msra.mxu0 0.0
          %1956 = vmatprep.subr.mxu0 0.0
          %1957 = vmatpush1.msra.mxu0 0.0
          %1958 = vmatprep.subr.mxu0 0.0
          %1959 = vmatpush1.msra.mxu0 0.0
          %1960 = vmatprep.subr.mxu0 0.0
          %1961 = vmatpush1.msra.mxu0 0.0
          %1962 = vmatprep.subr.mxu0 0.0
          %1963 = vmatpush1.msra.mxu0 0.0
          %1964 = vmatprep.subr.mxu0 0.0
          %1965 = vmatpush1.msra.mxu0 0.0
          %1966 = vmatprep.subr.mxu0 0.0
          %1967 = vmatpush1.msra.mxu0 0.0
          %1968 = vmatprep.subr.mxu0 0.0
          %1969 = vmatpush1.msra.mxu0 0.0
          %1970 = vmatprep.subr.mxu0 0.0
          %1971 = vmatpush1.msra.mxu0 0.0
          %1972 = vmatprep.subr.mxu0 0.0
          %1973 = vmatpush1.msra.mxu0 0.0
          %1974 = vmatprep.subr.mxu0 0.0
          %1975 = vmatpush1.msra.mxu0 0.0
          %1976 = vmatprep.subr.mxu0 0.0
          %1977 = vmatpush1.msra.mxu0 0.0
          %1978 = vmatprep.subr.mxu0 0.0
          %1979 = vmatpush1.msra.mxu0 0.0
          %1980 = vmatprep.subr.mxu0 0.0
          %1981 = vmatpush1.msra.mxu0 0.0
          %1982 = vmatprep.subr.mxu0 0.0
          %1983 = vmatpush1.msra.mxu0 0.0
          %1984 = vmatprep.subr.mxu0 0.0
          %1985 = vmatpush1.msra.mxu0 0.0
          %1986 = vmatprep.subr.mxu0 0.0
          %1987 = vmatpush1.msra.mxu0 0.0
          %1988 = vmatprep.subr.mxu0 0.0
          %1989 = vmatpush1.msra.mxu0 0.0
          %1990 = vmatprep.subr.mxu0 0.0
          %1991 = vmatpush1.msra.mxu0 0.0
          %1992 = vmatprep.mubr.f32.mxu0 0.0
          %1993 = vmatmul.mubr.f32.gmra.mrb[0].mxu0 %v1926
          %v1994 = vpop.f32.mrb[0].mxu0
          %v1995 = vadd.f32 0.0, %v1994
          %v1996 = vpop.f32.mrb[0].mxu0
          %1997 = vdwg.mxu0
          %v1998 = vadd.f32 %v1907, %v1995
          %s1999 = scalar_lea.vmem [#allocation4], 24
          %v2000 = vld [vmem:[%s1999] sm:$0xff]
          %v2001 = vrcp.pop %v2000
          %v2002 = vmul.f32 %v2000, %v2001
          %v2003 = vsub.f32 2.0, %v2002
          %v2004 = vmul.f32 %v2001, %v2003
          %s2005 = scalar_lea.vmem [#allocation5], 24
          %v2006 = vld [vmem:[%s2005] sm:$0xff]
          %2008 = vset.pattern.permute.xlu0 0
          %2009 = vperm.xlu0 %2008, %v2004
          %v2010 = vpop.permute.xlu0 %2009
          %v2012 = vmul.f32 %v2006, %v2010
          %v2013 = vld [vmem:[%s7 + $0x18] sm:$0xff]
          %v2015 = vsel %vm1002, %v2012, 0
          %2017 = vmatprep.subr.mxu0 0.0
          %2018 = vmatpush1.msra.mxu0 %v2013
          %2019 = vmatprep.subr.mxu0 0.0
          %2020 = vmatpush1.msra.mxu0 0.0
          %2021 = vmatprep.subr.mxu0 0.0
          %2022 = vmatpush1.msra.mxu0 0.0
          %2023 = vmatprep.subr.mxu0 0.0
          %2024 = vmatpush1.msra.mxu0 0.0
          %2025 = vmatprep.subr.mxu0 0.0
          %2026 = vmatpush1.msra.mxu0 0.0
          %2027 = vmatprep.subr.mxu0 0.0
          %2028 = vmatpush1.msra.mxu0 0.0
          %2029 = vmatprep.subr.mxu0 0.0
          %2030 = vmatpush1.msra.mxu0 0.0
          %2031 = vmatprep.subr.mxu0 0.0
          %2032 = vmatpush1.msra.mxu0 0.0
          %2033 = vmatprep.subr.mxu0 0.0
          %2034 = vmatpush1.msra.mxu0 0.0
          %2035 = vmatprep.subr.mxu0 0.0
          %2036 = vmatpush1.msra.mxu0 0.0
          %2037 = vmatprep.subr.mxu0 0.0
          %2038 = vmatpush1.msra.mxu0 0.0
          %2039 = vmatprep.subr.mxu0 0.0
          %2040 = vmatpush1.msra.mxu0 0.0
          %2041 = vmatprep.subr.mxu0 0.0
          %2042 = vmatpush1.msra.mxu0 0.0
          %2043 = vmatprep.subr.mxu0 0.0
          %2044 = vmatpush1.msra.mxu0 0.0
          %2045 = vmatprep.subr.mxu0 0.0
          %2046 = vmatpush1.msra.mxu0 0.0
          %2047 = vmatprep.subr.mxu0 0.0
          %2048 = vmatpush1.msra.mxu0 0.0
          %2049 = vmatprep.subr.mxu0 0.0
          %2050 = vmatpush1.msra.mxu0 0.0
          %2051 = vmatprep.subr.mxu0 0.0
          %2052 = vmatpush1.msra.mxu0 0.0
          %2053 = vmatprep.subr.mxu0 0.0
          %2054 = vmatpush1.msra.mxu0 0.0
          %2055 = vmatprep.subr.mxu0 0.0
          %2056 = vmatpush1.msra.mxu0 0.0
          %2057 = vmatprep.subr.mxu0 0.0
          %2058 = vmatpush1.msra.mxu0 0.0
          %2059 = vmatprep.subr.mxu0 0.0
          %2060 = vmatpush1.msra.mxu0 0.0
          %2061 = vmatprep.subr.mxu0 0.0
          %2062 = vmatpush1.msra.mxu0 0.0
          %2063 = vmatprep.subr.mxu0 0.0
          %2064 = vmatpush1.msra.mxu0 0.0
          %2065 = vmatprep.subr.mxu0 0.0
          %2066 = vmatpush1.msra.mxu0 0.0
          %2067 = vmatprep.subr.mxu0 0.0
          %2068 = vmatpush1.msra.mxu0 0.0
          %2069 = vmatprep.subr.mxu0 0.0
          %2070 = vmatpush1.msra.mxu0 0.0
          %2071 = vmatprep.subr.mxu0 0.0
          %2072 = vmatpush1.msra.mxu0 0.0
          %2073 = vmatprep.subr.mxu0 0.0
          %2074 = vmatpush1.msra.mxu0 0.0
          %2075 = vmatprep.subr.mxu0 0.0
          %2076 = vmatpush1.msra.mxu0 0.0
          %2077 = vmatprep.subr.mxu0 0.0
          %2078 = vmatpush1.msra.mxu0 0.0
          %2079 = vmatprep.subr.mxu0 0.0
          %2080 = vmatpush1.msra.mxu0 0.0
          %2081 = vmatprep.mubr.f32.mxu0 0.0
          %2082 = vmatmul.mubr.f32.gmra.mrb[0].mxu0 %v2015
          %v2083 = vpop.f32.mrb[0].mxu0
          %v2084 = vadd.f32 0.0, %v2083
          %v2085 = vpop.f32.mrb[0].mxu0
          %2086 = vdwg.mxu0
          %v2087 = vadd.f32 %v1998, %v2084
          %v2088 = vld [vmem:[%s481] sm:$0xff]
          %v2089 = vadd.f32 %v2088, %v2087
          %v2090 = vld [vmem:[%s9] sm:$0x1]
          %v2092 = vlaneseq
          %v2093 = vshrl.u32 %v2092, 7
          %v2094 = vsub.s32 0, %v2093
          %v2095 = vrot.slane %v2090, %v2094
          %v2097 = vadd.f32 %v2089, %v2095
          %v2098 = vsel %vm795, %v2097, 0.0
          %2099 = vadd.xlane.f32.xlu0 %v2098
          %v2100 = vpop.xlane.xlu0 %2099
          %v2101 = vrcp.pop 32.0
          %v2102 = vmul.f32 %v2100, %v2101
          %v2103 = vsub.f32 %v2097, %v2102
          %v2104 = vmul.f32 %v2103, %v2103
          %v2105 = vsel %vm795, %v2104, 0.0
          %2106 = vadd.xlane.f32.xlu0 %v2105
          %v2107 = vpop.xlane.xlu0 %2106
          %v2108 = vmul.f32 %v2107, %v2101
          %v2109 = vadd.f32 %v2108, 1e-05
          %v2110 = vrsqrt.pop %v2109
          %v2111 = vmul.f32 %v2103, %v2110
          %v2112 = vld [vmem:[%s10] sm:$0x1]
          %v2114 = vlaneseq
          %v2115 = vshrl.u32 %v2114, 7
          %v2116 = vsub.s32 0, %v2115
          %v2117 = vrot.slane %v2112, %v2116
          %v2119 = vmul.f32 %v2111, %v2117
          %v2120 = vld [vmem:[%s11] sm:$0x1]
          %v2122 = vlaneseq
          %v2123 = vshrl.u32 %v2122, 7
          %v2124 = vsub.s32 0, %v2123
          %v2125 = vrot.slane %v2120, %v2124
          %v2127 = vadd.f32 %v2119, %v2125
          %2128 = vst.msk [vmem:[%s477] sm:$0xff] %vm795, %v2127
        $region76: #{tpu_custom_call.1} parent=67 // pred_fallthru
          _
        %s2129 = sand.u32 %s322, 1
        %s2130 = scalar_lea.sflag [#allocation7], %s2129
        %s2131 = sand.u32 %s322, 1
        %s2132 = smul.addr %s2131, 8
        %s2133 = scalar_lea.vmem [#allocation6], %s2132
        // Predicated region
        $region77: #{tpu_custom_call.1} parent=67 // pred_check
          %p2134 = pneg %p332
        $region78: #{tpu_custom_call.1} parent=67 // pred_check_branch
          %2136 = sbr.rel (%p2134) target = $region80
        $region79: #{tpu_custom_call.1} parent=67 // pred_region
          %s2138 = ssub.s32 128, 128
          %2139 = vsyncadd %s2130, %s2138
          %s2140 = smul.addr %s30, 128
          %s2141 = scalar_lea.hbm %s12, %s2140
          %s2143 = sshll.u32 %s2133, 4
          %s2144 = int_to_ptr.vmem [resolvable:$true] %s2143
          %2146 = dma.vmem_to_hbm [thread:$0]  %s2144, 128, %s2141, %s2130
        $region80: #{tpu_custom_call.1} parent=67 // pred_fallthru
          _
      $region68: #{tpu_custom_call.1} parent=5 // pred_fallthru
        _
      %p2147 = scmp.le.s32.totalorder 2, %s21
      // Predicated region
      $region81: #{tpu_custom_call.1} parent=5 // pred_check
        %p2148 = pneg %p2147
      $region82: #{tpu_custom_call.1} parent=5 // pred_check_branch
        %2150 = sbr.rel (%p2148) target = $region84
      $region83: #{tpu_custom_call.1} parent=5 // pred_region
        %s2151 = ssub.s32 %s21, 2
        // Predicated region
        $region85: #{tpu_custom_call.1} parent=83 // pred_check
          %p2152 = pneg %p338
        $region86: #{tpu_custom_call.1} parent=83 // pred_check_branch
          %2154 = sbr.rel (%p2152) target = $region88
        $region87: #{tpu_custom_call.1} parent=83 // pred_region
          %s2155 = sand.u32 %s323, 1
          %s2156 = scalar_lea.sflag [#allocation7], %s2155
          %s2157 = sand.u32 %s323, 1
          %s2158 = smul.addr %s2157, 8
          %s2159 = scalar_lea.vmem [#allocation6], %s2158
          %2160 = dma.done %s2156, 128
        $region88: #{tpu_custom_call.1} parent=83 // pred_fallthru
          _
      $region84: #{tpu_custom_call.1} parent=5 // pred_fallthru
        _
    $region6: #{tpu_custom_call.1} parent=1 // loop_footer
      %s25 = sadd.s32 1, %s21
    $region7: #{tpu_custom_call.1} parent=1 // loop_footer_branch
      %20 = sbr.rel target = $region3
    $region8: #{tpu_custom_call.1} parent=1 // loop_exit
      _
    %2161 = vsyncpa [#allocation7], 1
    %s2162 = scalar_lea.sflag [#allocation7], 1
    %2163 = vsyncpa %s2162, 1

</llo_original>
